<compile_context>
chip_gen: v7x
topology: tpu7x:2x2x1
jax: 0.10.0
libtpu: 0.0.40
codegen_flags: <defaults>
</compile_context>

<pallas_src>
import math
import jax
import jax.numpy as jnp
from jax import lax
from jax.experimental import pallas as pl
from jax.experimental.pallas import tpu as pltpu


def _layernorm(x, gamma, beta, eps=1e-5):
    # single-pass: sum and sum-of-squares in one sweep (fewer XLU reductions)
    inv_n = 1.0 / x.shape[-1]
    s1 = jnp.sum(x, axis=-1, keepdims=True)
    s2 = jnp.sum(x * x, axis=-1, keepdims=True)
    mu = s1 * inv_n
    var = s2 * inv_n - mu * mu
    return (x - mu) * lax.rsqrt(var + eps) * gamma + beta


def _gelu_exact(x):
    # matches torch.nn.GELU() default (erf formulation)
    return 0.5 * x * (1.0 + lax.erf(x * (1.0 / math.sqrt(2.0))))


def make_block_kernel(num_heads, head_dim):
    H, Dh = num_heads, head_dim
    bf16, f32 = jnp.bfloat16, jnp.float32

    def kernel(xq_ref, xkv_ref, g1_ref, b1_ref, wq_ref, wk_ref, wv_ref,
               wp_ref, bp_ref, g2_ref, b2_ref, w1_ref, bf1_ref, w2_ref,
               bf2_ref, out_ref, attn_ref, k_sc, v_sc, q_sc, ctx_sc):
        qi = pl.program_id(1)

        xq = xq_ref[0]                         # (tq, C) f32 : query-row tile
        tq, C = xq.shape
        g1 = g1_ref[...]
        b1 = b1_ref[...]

        # ---- K / V over the full sequence: computed once per batch element
        #      (first query tile) and cached head-major in VMEM scratch. ----
        @pl.when(qi == 0)
        def _():
            xnkv = _layernorm(xkv_ref[0], g1, b1).astype(bf16)        # (N, C)
            k2 = jnp.dot(xnkv, wk_ref[...],
                         preferred_element_type=f32).astype(bf16)     # (N, C)
            v2 = jnp.dot(xnkv, wv_ref[...],
                         preferred_element_type=f32).astype(bf16)     # (N, C)
            for h in range(H):                 # head split: data movement only
                k_sc[h] = k2[:, h * Dh:(h + 1) * Dh]
                v_sc[h] = v2[:, h * Dh:(h + 1) * Dh]

        # ---- Q for this query tile (softmax scale pre-folded into wq) ----
        xnq = _layernorm(xq, g1, b1).astype(bf16)
        q2 = jnp.dot(xnq, wq_ref[...],
                     preferred_element_type=f32).astype(bf16)          # (tq, C)
        for h in range(H):
            q_sc[h] = q2[:, h * Dh:(h + 1) * Dh]

        # ---- scaled-dot-product attention, all heads batched ----
        s = jnp.einsum('hqd,hnd->hqn', q_sc[...], k_sc[...],
                       preferred_element_type=f32)                     # (H, tq, N)
        s = s - jnp.max(s, axis=-1, keepdims=True)
        e = jnp.exp(s)
        p = e * pl.reciprocal(jnp.sum(e, axis=-1, keepdims=True), approx=True)
        attn_ref[0] = p                                                # dense store

        ctx = jnp.einsum('hqn,hnd->hqd', p.astype(bf16), v_sc[...],
                         preferred_element_type=f32).astype(bf16)      # (H, tq, Dh)
        for h in range(H):                     # head merge: data movement only
            ctx_sc[:, h * Dh:(h + 1) * Dh] = ctx[h]

        # ---- output projection + residual 1 ----
        x_att = jnp.dot(ctx_sc[...], wp_ref[...],
                        preferred_element_type=f32) + bp_ref[...]
        x1 = xq + x_att

        # ---- norm2 + MLP + residual 2 ----
        x1n = _layernorm(x1, g2_ref[...], b2_ref[...]).astype(bf16)
        h1 = jnp.dot(x1n, w1_ref[...],
                     preferred_element_type=f32) + bf1_ref[...]
        h1 = _gelu_exact(h1)
        y = jnp.dot(h1.astype(bf16), w2_ref[...],
                    preferred_element_type=f32) + bf2_ref[...]
        out_ref[0] = x1 + y

    return kernel


def vit_block_forward(x, params, num_heads, q_tile=None):
    B, N, C = x.shape
    H = num_heads
    assert C % H == 0
    Dh = C // H
    scale = Dh ** (-0.5)

    (g1, b1, wqkv, wproj, bproj, g2, b2, w1, bf1, w2, bf2) = params
    Hid = w1.shape[0]
    f32, bf16 = jnp.float32, jnp.bfloat16

    # ---- one-time host-side weight repacking: (in, out) layout, bf16,
    #      softmax scale folded into the q weight (accumulation stays f32) ----
    wq_t = (scale * wqkv[:C]).T.astype(bf16)          # (C, C)
    wk_t = wqkv[C:2 * C].T.astype(bf16)               # (C, C)
    wv_t = wqkv[2 * C:].T.astype(bf16)                # (C, C)
    wp_t = wproj.T.astype(bf16)                       # (C, C)
    w1_t = w1.T.astype(bf16)                          # (C, Hid)
    w2_t = w2.T.astype(bf16)                          # (Hid, C)

    g1r = g1.reshape(1, C).astype(f32)
    b1r = b1.reshape(1, C).astype(f32)
    bpr = bproj.reshape(1, C).astype(f32)
    g2r = g2.reshape(1, C).astype(f32)
    b2r = b2.reshape(1, C).astype(f32)
    bf1r = bf1.reshape(1, Hid).astype(f32)
    bf2r = bf2.reshape(1, C).astype(f32)

    x = x.astype(f32)

    # ---- query-row tiling (bounds the (H, tq, N) softmax slab in VMEM) ----
    if q_tile is None:
        if N % 256 == 0:
            q_tile = 256
        elif N % 128 == 0:
            q_tile = 128
        else:
            q_tile = N            # small / ragged N: single tile
    assert N % q_tile == 0
    NQ = N // q_tile

    # x is passed twice: once tiled over query rows, once full (keys/values).
    ins = (x, x, g1r, b1r, wq_t, wk_t, wv_t, wp_t, bpr, g2r, b2r,
           w1_t, bf1r, w2_t, bf2r)

    def const_spec(a):
        nd = a.ndim
        return pl.BlockSpec(a.shape, lambda b, qi, _nd=nd: (0,) * _nd)

    in_specs = ([pl.BlockSpec((1, q_tile, C), lambda b, qi: (b, qi, 0)),
                 pl.BlockSpec((1, N, C), lambda b, qi: (b, 0, 0))] +
                [const_spec(a) for a in ins[2:]])

    out_specs = [pl.BlockSpec((1, q_tile, C), lambda b, qi: (b, qi, 0)),
                 pl.BlockSpec((1, H, q_tile, N), lambda b, qi: (b, 0, qi, 0))]
    out_shape = (jax.ShapeDtypeStruct((B, N, C), f32),
                 jax.ShapeDtypeStruct((B, H, N, N), f32))

    scratch_shapes = [
        pltpu.VMEM((H, N, Dh), bf16),        # K, head-major (cached across qi)
        pltpu.VMEM((H, N, Dh), bf16),        # V, head-major (cached across qi)
        pltpu.VMEM((H, q_tile, Dh), bf16),   # Q tile, head-major
        pltpu.VMEM((q_tile, C), bf16),       # merged attention context
    ]

    kernel = make_block_kernel(H, Dh)
    return pl.pallas_call(
        kernel,
        out_shape=out_shape,
        grid_spec=pltpu.PrefetchScalarGridSpec(
            num_scalar_prefetch=0,
            grid=(B, NQ),
            in_specs=in_specs,
            out_specs=out_specs,
            scratch_shapes=scratch_shapes,
        ),
        compiler_params=pltpu.CompilerParams(
            # qi carries the K/V scratch cache -> must stay sequential.
            dimension_semantics=("parallel", "arbitrary"),
            vmem_limit_bytes=64 * 1024 * 1024,
        ),
    )(*ins)


def init_params(key, dim, num_heads, mlp_ratio=4.0):
    hid = int(dim * mlp_ratio)
    ks = jax.random.split(key, 8)
    std = 0.02
    g1 = jnp.ones((dim,), jnp.float32)
    b1 = jnp.zeros((dim,), jnp.float32)
    wqkv = std * jax.random.normal(ks[0], (3 * dim, dim), jnp.float32)
    wproj = std * jax.random.normal(ks[1], (dim, dim), jnp.float32)
    bproj = std * jax.random.normal(ks[2], (dim,), jnp.float32)
    g2 = jnp.ones((dim,), jnp.float32)
    b2 = jnp.zeros((dim,), jnp.float32)
    w1 = std * jax.random.normal(ks[3], (hid, dim), jnp.float32)
    bf1 = std * jax.random.normal(ks[4], (hid,), jnp.float32)
    w2 = std * jax.random.normal(ks[5], (dim, hid), jnp.float32)
    bf2 = std * jax.random.normal(ks[6], (dim,), jnp.float32)
    return (g1, b1, wqkv, wproj, bproj, g2, b2, w1, bf1, w2, bf2)


def _reference_block(x, params, num_heads):
    """Pure-JAX f32 reference matching the PyTorch Block forward."""
    (g1, b1, wqkv, wproj, bproj, g2, b2, w1, bf1, w2, bf2) = params
    B, N, C = x.shape
    H = num_heads
    Dh = C // H
    scale = Dh ** (-0.5)

    def ln(z, g, b, eps=1e-5):
        mu = jnp.mean(z, axis=-1, keepdims=True)
        var = jnp.mean((z - mu) ** 2, axis=-1, keepdims=True)
        return (z - mu) / jnp.sqrt(var + eps) * g + b

    xn = ln(x, g1, b1)
    qkv = (xn @ wqkv.T).reshape(B, N, 3, H, Dh).transpose(2, 0, 3, 1, 4)
    q, k, v = qkv[0], qkv[1], qkv[2]
    attn = jax.nn.softmax((q @ jnp.swapaxes(k, -1, -2)) * scale, axis=-1)
    xa = (attn @ v).transpose(0, 2, 1, 3).reshape(B, N, C)
    xa = xa @ wproj.T + bproj
    x1 = x + xa
    h = ln(x1, g2, b2) @ w1.T + bf1
    h = 0.5 * h * (1.0 + jax.lax.erf(h / jnp.sqrt(2.0)))
    y = h @ w2.T + bf2
    return x1 + y, attn


if __name__ == "__main__":
    B, N, C = 2, 8, 32
    num_heads = 4
    key = jax.random.PRNGKey(0)
    kx, kp = jax.random.split(key)
    x = jax.random.normal(kx, (B, N, C), jnp.float32)
    params = init_params(kp, C, num_heads, mlp_ratio=4.0)

    out, attn = vit_block_forward(x, params, num_heads)
    jax.block_until_ready((out, attn))

    assert out.shape == (B, N, C)
    assert attn.shape == (B, num_heads, N, N)

    # numerical check vs. pure-JAX f32 reference (bf16 matmuls + approx
    # reciprocal -> loose-ish tolerance)
    ref_out, ref_attn = _reference_block(x, params, num_heads)
    assert bool(jnp.allclose(out, ref_out, atol=3e-2, rtol=3e-2)), \
        float(jnp.max(jnp.abs(out - ref_out)))
    assert bool(jnp.allclose(attn, ref_attn, atol=3e-2, rtol=3e-2)), \
        float(jnp.max(jnp.abs(attn - ref_attn)))
    assert bool(jnp.allclose(jnp.sum(attn, axis=-1), 1.0, atol=1e-2))
    print("KERNEL_OK")
</pallas_src>

<mosaic_0001>
module attributes {stable_mosaic.version = 11 : i64} {
  func.func @kernel(%arg0: i32, %arg1: i32, %arg2: memref<1x8x32xf32, #tpu.memory_space<vmem>>, %arg3: memref<1x8x32xf32, #tpu.memory_space<vmem>>, %arg4: memref<1x32xf32, #tpu.memory_space<vmem>>, %arg5: memref<1x32xf32, #tpu.memory_space<vmem>>, %arg6: memref<32x32xbf16, #tpu.memory_space<vmem>>, %arg7: memref<32x32xbf16, #tpu.memory_space<vmem>>, %arg8: memref<32x32xbf16, #tpu.memory_space<vmem>>, %arg9: memref<32x32xbf16, #tpu.memory_space<vmem>>, %arg10: memref<1x32xf32, #tpu.memory_space<vmem>>, %arg11: memref<1x32xf32, #tpu.memory_space<vmem>>, %arg12: memref<1x32xf32, #tpu.memory_space<vmem>>, %arg13: memref<32x128xbf16, #tpu.memory_space<vmem>>, %arg14: memref<1x128xf32, #tpu.memory_space<vmem>>, %arg15: memref<128x32xbf16, #tpu.memory_space<vmem>>, %arg16: memref<1x32xf32, #tpu.memory_space<vmem>>, %arg17: memref<1x8x32xf32, #tpu.memory_space<vmem>>, %arg18: memref<1x4x8x8xf32, #tpu.memory_space<vmem>>, %arg19: memref<4x8x8xbf16, #tpu.memory_space<vmem>>, %arg20: memref<4x8x8xbf16, #tpu.memory_space<vmem>>, %arg21: memref<4x8x8xbf16, #tpu.memory_space<vmem>>, %arg22: memref<8x32xbf16, #tpu.memory_space<vmem>>) attributes {dimension_semantics = [#tpu.dimension_semantics<parallel>, #tpu.dimension_semantics<arbitrary>], iteration_bounds = array<i64: 2, 1>, scalar_prefetch = 0 : i64, scratch_operands = 4 : i64, tpu.core_type = #tpu.core_type<tc>, window_params = [{transform_indices = @transform_0, window_bounds = array<i64: 1, 8, 32>}, {transform_indices = @transform_1, window_bounds = array<i64: 1, 8, 32>}, {pipeline_mode = #tpu.pipeline_mode<synchronous>, transform_indices = @transform_2, window_bounds = array<i64: 1, 32>}, {pipeline_mode = #tpu.pipeline_mode<synchronous>, transform_indices = @transform_3, window_bounds = array<i64: 1, 32>}, {pipeline_mode = #tpu.pipeline_mode<synchronous>, transform_indices = @transform_4, window_bounds = array<i64: 32, 32>}, {pipeline_mode = #tpu.pipeline_mode<synchronous>, transform_indices = @transform_5, window_bounds = array<i64: 32, 32>}, {pipeline_mode = #tpu.pipeline_mode<synchronous>, transform_indices = @transform_6, window_bounds = array<i64: 32, 32>}, {pipeline_mode = #tpu.pipeline_mode<synchronous>, transform_indices = @transform_7, window_bounds = array<i64: 32, 32>}, {pipeline_mode = #tpu.pipeline_mode<synchronous>, transform_indices = @transform_8, window_bounds = array<i64: 1, 32>}, {pipeline_mode = #tpu.pipeline_mode<synchronous>, transform_indices = @transform_9, window_bounds = array<i64: 1, 32>}, {pipeline_mode = #tpu.pipeline_mode<synchronous>, transform_indices = @transform_10, window_bounds = array<i64: 1, 32>}, {pipeline_mode = #tpu.pipeline_mode<synchronous>, transform_indices = @transform_11, window_bounds = array<i64: 32, 128>}, {pipeline_mode = #tpu.pipeline_mode<synchronous>, transform_indices = @transform_12, window_bounds = array<i64: 1, 128>}, {pipeline_mode = #tpu.pipeline_mode<synchronous>, transform_indices = @transform_13, window_bounds = array<i64: 128, 32>}, {pipeline_mode = #tpu.pipeline_mode<synchronous>, transform_indices = @transform_14, window_bounds = array<i64: 1, 32>}, {transform_indices = @transform_15, window_bounds = array<i64: 1, 8, 32>}, {transform_indices = @transform_16, window_bounds = array<i64: 1, 4, 8, 8>}]} {
    %c0 = arith.constant 0 : index
    %c0_0 = arith.constant 0 : index
    %c0_1 = arith.constant 0 : index
    %0 = vector.load %arg2[%c0, %c0_0, %c0_1] : memref<1x8x32xf32, #tpu.memory_space<vmem>>, vector<1x8x32xf32>
    %1 = vector.shape_cast %0 : vector<1x8x32xf32> to vector<8x32xf32>
    %c0_2 = arith.constant 0 : index
    %c0_3 = arith.constant 0 : index
    %2 = vector.load %arg4[%c0_2, %c0_3] : memref<1x32xf32, #tpu.memory_space<vmem>>, vector<1x32xf32>
    %c0_4 = arith.constant 0 : index
    %c0_5 = arith.constant 0 : index
    %3 = vector.load %arg5[%c0_4, %c0_5] : memref<1x32xf32, #tpu.memory_space<vmem>>, vector<1x32xf32>
    %c0_i32 = arith.constant 0 : i32
    %4 = arith.cmpi eq, %arg1, %c0_i32 : i32
    %5 = arith.extui %4 : i1 to i32
    %c0_i32_6 = arith.constant 0 : i32
    %6 = arith.cmpi ne, %5, %c0_i32_6 : i32
    scf.if %6 {
      %c0_77 = arith.constant 0 : index
      %c0_78 = arith.constant 0 : index
      %c0_79 = arith.constant 0 : index
      %136 = vector.load %arg3[%c0_77, %c0_78, %c0_79] : memref<1x8x32xf32, #tpu.memory_space<vmem>>, vector<1x8x32xf32>
      %137 = vector.shape_cast %136 : vector<1x8x32xf32> to vector<8x32xf32>
      %cst_80 = arith.constant dense<0.000000e+00> : vector<8xf32>
      %138 = vector.multi_reduction <add>, %137, %cst_80 [1] : vector<8x32xf32> to vector<8xf32>
      %139 = vector.shape_cast %138 : vector<8xf32> to vector<8x1xf32>
      %140 = arith.mulf %137, %137 : vector<8x32xf32>
      %cst_81 = arith.constant dense<0.000000e+00> : vector<8xf32>
      %141 = vector.multi_reduction <add>, %140, %cst_81 [1] : vector<8x32xf32> to vector<8xf32>
      %142 = vector.shape_cast %141 : vector<8xf32> to vector<8x1xf32>
      %cst_82 = arith.constant 3.125000e-02 : f32
      %143 = vector.broadcast %cst_82 : f32 to vector<8x1xf32>
      %144 = arith.mulf %139, %143 : vector<8x1xf32>
      %cst_83 = arith.constant 3.125000e-02 : f32
      %145 = vector.broadcast %cst_83 : f32 to vector<8x1xf32>
      %146 = arith.mulf %142, %145 : vector<8x1xf32>
      %147 = arith.mulf %144, %144 : vector<8x1xf32>
      %148 = arith.subf %146, %147 : vector<8x1xf32>
      %149 = vector.broadcast %144 : vector<8x1xf32> to vector<8x32xf32>
      %150 = arith.subf %137, %149 : vector<8x32xf32>
      %cst_84 = arith.constant 9.99999974E-6 : f32
      %151 = vector.broadcast %cst_84 : f32 to vector<8x1xf32>
      %152 = arith.addf %148, %151 : vector<8x1xf32>
      %153 = math.rsqrt %152 : vector<8x1xf32>
      %154 = vector.broadcast %153 : vector<8x1xf32> to vector<8x32xf32>
      %155 = arith.mulf %150, %154 : vector<8x32xf32>
      %156 = vector.broadcast %2 : vector<1x32xf32> to vector<8x32xf32>
      %157 = arith.mulf %155, %156 : vector<8x32xf32>
      %158 = vector.broadcast %3 : vector<1x32xf32> to vector<8x32xf32>
      %159 = arith.addf %157, %158 : vector<8x32xf32>
      %160 = arith.truncf %159 : vector<8x32xf32> to vector<8x32xbf16>
      %c0_85 = arith.constant 0 : index
      %c0_86 = arith.constant 0 : index
      %161 = vector.load %arg7[%c0_85, %c0_86] : memref<32x32xbf16, #tpu.memory_space<vmem>>, vector<32x32xbf16>
      %cst_87 = arith.constant dense<0.000000e+00> : vector<8x32xf32>
      %162 = tpu.matmul %160, %161, %cst_87 {dimension_numbers = #tpu.dot_dimension_numbers<[1], [0], [0], [1], [0, 0, 1, 1], [], []>} : vector<8x32xbf16>, vector<32x32xbf16>, vector<8x32xf32> -> vector<8x32xf32>
      %163 = arith.truncf %162 : vector<8x32xf32> to vector<8x32xbf16>
      %c0_88 = arith.constant 0 : index
      %c0_89 = arith.constant 0 : index
      %164 = vector.load %arg8[%c0_88, %c0_89] : memref<32x32xbf16, #tpu.memory_space<vmem>>, vector<32x32xbf16>
      %cst_90 = arith.constant dense<0.000000e+00> : vector<8x32xf32>
      %165 = tpu.matmul %160, %164, %cst_90 {dimension_numbers = #tpu.dot_dimension_numbers<[1], [0], [0], [1], [0, 0, 1, 1], [], []>} : vector<8x32xbf16>, vector<32x32xbf16>, vector<8x32xf32> -> vector<8x32xf32>
      %166 = arith.truncf %165 : vector<8x32xf32> to vector<8x32xbf16>
      %167 = vector.extract_strided_slice %163 {offsets = [0, 0], sizes = [8, 8], strides = [1, 1]} : vector<8x32xbf16> to vector<8x8xbf16>
      %c0_91 = arith.constant 0 : index
      %c0_92 = arith.constant 0 : index
      %c0_93 = arith.constant 0 : index
      %168 = vector.load %arg19[%c0_91, %c0_92, %c0_93] : memref<4x8x8xbf16, #tpu.memory_space<vmem>>, vector<1x8x8xbf16>
      %169 = vector.shape_cast %168 : vector<1x8x8xbf16> to vector<8x8xbf16>
      %170 = vector.shape_cast %167 : vector<8x8xbf16> to vector<1x8x8xbf16>
      tpu.vector_store %arg19[%c0_91, %c0_92, %c0_93], %170 {strides = array<i32>} : memref<4x8x8xbf16, #tpu.memory_space<vmem>>, vector<1x8x8xbf16>,
      %171 = vector.extract_strided_slice %166 {offsets = [0, 0], sizes = [8, 8], strides = [1, 1]} : vector<8x32xbf16> to vector<8x8xbf16>
      %c0_94 = arith.constant 0 : index
      %c0_95 = arith.constant 0 : index
      %c0_96 = arith.constant 0 : index
      %172 = vector.load %arg20[%c0_94, %c0_95, %c0_96] : memref<4x8x8xbf16, #tpu.memory_space<vmem>>, vector<1x8x8xbf16>
      %173 = vector.shape_cast %172 : vector<1x8x8xbf16> to vector<8x8xbf16>
      %174 = vector.shape_cast %171 : vector<8x8xbf16> to vector<1x8x8xbf16>
      tpu.vector_store %arg20[%c0_94, %c0_95, %c0_96], %174 {strides = array<i32>} : memref<4x8x8xbf16, #tpu.memory_space<vmem>>, vector<1x8x8xbf16>,
      %175 = vector.extract_strided_slice %163 {offsets = [0, 8], sizes = [8, 8], strides = [1, 1]} : vector<8x32xbf16> to vector<8x8xbf16>
      %c1_97 = arith.constant 1 : index
      %c0_98 = arith.constant 0 : index
      %c0_99 = arith.constant 0 : index
      %176 = vector.load %arg19[%c1_97, %c0_98, %c0_99] : memref<4x8x8xbf16, #tpu.memory_space<vmem>>, vector<1x8x8xbf16>
      %177 = vector.shape_cast %176 : vector<1x8x8xbf16> to vector<8x8xbf16>
      %178 = vector.shape_cast %175 : vector<8x8xbf16> to vector<1x8x8xbf16>
      tpu.vector_store %arg19[%c1_97, %c0_98, %c0_99], %178 {strides = array<i32>} : memref<4x8x8xbf16, #tpu.memory_space<vmem>>, vector<1x8x8xbf16>,
      %179 = vector.extract_strided_slice %166 {offsets = [0, 8], sizes = [8, 8], strides = [1, 1]} : vector<8x32xbf16> to vector<8x8xbf16>
      %c1_100 = arith.constant 1 : index
      %c0_101 = arith.constant 0 : index
      %c0_102 = arith.constant 0 : index
      %180 = vector.load %arg20[%c1_100, %c0_101, %c0_102] : memref<4x8x8xbf16, #tpu.memory_space<vmem>>, vector<1x8x8xbf16>
      %181 = vector.shape_cast %180 : vector<1x8x8xbf16> to vector<8x8xbf16>
      %182 = vector.shape_cast %179 : vector<8x8xbf16> to vector<1x8x8xbf16>
      tpu.vector_store %arg20[%c1_100, %c0_101, %c0_102], %182 {strides = array<i32>} : memref<4x8x8xbf16, #tpu.memory_space<vmem>>, vector<1x8x8xbf16>,
      %183 = vector.extract_strided_slice %163 {offsets = [0, 16], sizes = [8, 8], strides = [1, 1]} : vector<8x32xbf16> to vector<8x8xbf16>
      %c2_103 = arith.constant 2 : index
      %c0_104 = arith.constant 0 : index
      %c0_105 = arith.constant 0 : index
      %184 = vector.load %arg19[%c2_103, %c0_104, %c0_105] : memref<4x8x8xbf16, #tpu.memory_space<vmem>>, vector<1x8x8xbf16>
      %185 = vector.shape_cast %184 : vector<1x8x8xbf16> to vector<8x8xbf16>
      %186 = vector.shape_cast %183 : vector<8x8xbf16> to vector<1x8x8xbf16>
      tpu.vector_store %arg19[%c2_103, %c0_104, %c0_105], %186 {strides = array<i32>} : memref<4x8x8xbf16, #tpu.memory_space<vmem>>, vector<1x8x8xbf16>,
      %187 = vector.extract_strided_slice %166 {offsets = [0, 16], sizes = [8, 8], strides = [1, 1]} : vector<8x32xbf16> to vector<8x8xbf16>
      %c2_106 = arith.constant 2 : index
      %c0_107 = arith.constant 0 : index
      %c0_108 = arith.constant 0 : index
      %188 = vector.load %arg20[%c2_106, %c0_107, %c0_108] : memref<4x8x8xbf16, #tpu.memory_space<vmem>>, vector<1x8x8xbf16>
      %189 = vector.shape_cast %188 : vector<1x8x8xbf16> to vector<8x8xbf16>
      %190 = vector.shape_cast %187 : vector<8x8xbf16> to vector<1x8x8xbf16>
      tpu.vector_store %arg20[%c2_106, %c0_107, %c0_108], %190 {strides = array<i32>} : memref<4x8x8xbf16, #tpu.memory_space<vmem>>, vector<1x8x8xbf16>,
      %191 = vector.extract_strided_slice %163 {offsets = [0, 24], sizes = [8, 8], strides = [1, 1]} : vector<8x32xbf16> to vector<8x8xbf16>
      %c3_109 = arith.constant 3 : index
      %c0_110 = arith.constant 0 : index
      %c0_111 = arith.constant 0 : index
      %192 = vector.load %arg19[%c3_109, %c0_110, %c0_111] : memref<4x8x8xbf16, #tpu.memory_space<vmem>>, vector<1x8x8xbf16>
      %193 = vector.shape_cast %192 : vector<1x8x8xbf16> to vector<8x8xbf16>
      %194 = vector.shape_cast %191 : vector<8x8xbf16> to vector<1x8x8xbf16>
      tpu.vector_store %arg19[%c3_109, %c0_110, %c0_111], %194 {strides = array<i32>} : memref<4x8x8xbf16, #tpu.memory_space<vmem>>, vector<1x8x8xbf16>,
      %195 = vector.extract_strided_slice %166 {offsets = [0, 24], sizes = [8, 8], strides = [1, 1]} : vector<8x32xbf16> to vector<8x8xbf16>
      %c3_112 = arith.constant 3 : index
      %c0_113 = arith.constant 0 : index
      %c0_114 = arith.constant 0 : index
      %196 = vector.load %arg20[%c3_112, %c0_113, %c0_114] : memref<4x8x8xbf16, #tpu.memory_space<vmem>>, vector<1x8x8xbf16>
      %197 = vector.shape_cast %196 : vector<1x8x8xbf16> to vector<8x8xbf16>
      %198 = vector.shape_cast %195 : vector<8x8xbf16> to vector<1x8x8xbf16>
      tpu.vector_store %arg20[%c3_112, %c0_113, %c0_114], %198 {strides = array<i32>} : memref<4x8x8xbf16, #tpu.memory_space<vmem>>, vector<1x8x8xbf16>,
    } else {
    }
    %cst = arith.constant dense<0.000000e+00> : vector<8xf32>
    %7 = vector.multi_reduction <add>, %1, %cst [1] : vector<8x32xf32> to vector<8xf32>
    %8 = vector.shape_cast %7 : vector<8xf32> to vector<8x1xf32>
    %9 = arith.mulf %1, %1 : vector<8x32xf32>
    %cst_7 = arith.constant dense<0.000000e+00> : vector<8xf32>
    %10 = vector.multi_reduction <add>, %9, %cst_7 [1] : vector<8x32xf32> to vector<8xf32>
    %11 = vector.shape_cast %10 : vector<8xf32> to vector<8x1xf32>
    %cst_8 = arith.constant 3.125000e-02 : f32
    %12 = vector.broadcast %cst_8 : f32 to vector<8x1xf32>
    %13 = arith.mulf %8, %12 : vector<8x1xf32>
    %cst_9 = arith.constant 3.125000e-02 : f32
    %14 = vector.broadcast %cst_9 : f32 to vector<8x1xf32>
    %15 = arith.mulf %11, %14 : vector<8x1xf32>
    %16 = arith.mulf %13, %13 : vector<8x1xf32>
    %17 = arith.subf %15, %16 : vector<8x1xf32>
    %18 = vector.broadcast %13 : vector<8x1xf32> to vector<8x32xf32>
    %19 = arith.subf %1, %18 : vector<8x32xf32>
    %cst_10 = arith.constant 9.99999974E-6 : f32
    %20 = vector.broadcast %cst_10 : f32 to vector<8x1xf32>
    %21 = arith.addf %17, %20 : vector<8x1xf32>
    %22 = math.rsqrt %21 : vector<8x1xf32>
    %23 = vector.broadcast %22 : vector<8x1xf32> to vector<8x32xf32>
    %24 = arith.mulf %19, %23 : vector<8x32xf32>
    %25 = vector.broadcast %2 : vector<1x32xf32> to vector<8x32xf32>
    %26 = arith.mulf %24, %25 : vector<8x32xf32>
    %27 = vector.broadcast %3 : vector<1x32xf32> to vector<8x32xf32>
    %28 = arith.addf %26, %27 : vector<8x32xf32>
    %29 = arith.truncf %28 : vector<8x32xf32> to vector<8x32xbf16>
    %c0_11 = arith.constant 0 : index
    %c0_12 = arith.constant 0 : index
    %30 = vector.load %arg6[%c0_11, %c0_12] : memref<32x32xbf16, #tpu.memory_space<vmem>>, vector<32x32xbf16>
    %cst_13 = arith.constant dense<0.000000e+00> : vector<8x32xf32>
    %31 = tpu.matmul %29, %30, %cst_13 {dimension_numbers = #tpu.dot_dimension_numbers<[1], [0], [0], [1], [0, 0, 1, 1], [], []>} : vector<8x32xbf16>, vector<32x32xbf16>, vector<8x32xf32> -> vector<8x32xf32>
    %32 = arith.truncf %31 : vector<8x32xf32> to vector<8x32xbf16>
    %33 = vector.extract_strided_slice %32 {offsets = [0, 0], sizes = [8, 8], strides = [1, 1]} : vector<8x32xbf16> to vector<8x8xbf16>
    %c0_14 = arith.constant 0 : index
    %c0_15 = arith.constant 0 : index
    %c0_16 = arith.constant 0 : index
    %34 = vector.load %arg21[%c0_14, %c0_15, %c0_16] : memref<4x8x8xbf16, #tpu.memory_space<vmem>>, vector<1x8x8xbf16>
    %35 = vector.shape_cast %34 : vector<1x8x8xbf16> to vector<8x8xbf16>
    %36 = vector.shape_cast %33 : vector<8x8xbf16> to vector<1x8x8xbf16>
    tpu.vector_store %arg21[%c0_14, %c0_15, %c0_16], %36 {strides = array<i32>} : memref<4x8x8xbf16, #tpu.memory_space<vmem>>, vector<1x8x8xbf16>,
    %37 = vector.extract_strided_slice %32 {offsets = [0, 8], sizes = [8, 8], strides = [1, 1]} : vector<8x32xbf16> to vector<8x8xbf16>
    %c1 = arith.constant 1 : index
    %c0_17 = arith.constant 0 : index
    %c0_18 = arith.constant 0 : index
    %38 = vector.load %arg21[%c1, %c0_17, %c0_18] : memref<4x8x8xbf16, #tpu.memory_space<vmem>>, vector<1x8x8xbf16>
    %39 = vector.shape_cast %38 : vector<1x8x8xbf16> to vector<8x8xbf16>
    %40 = vector.shape_cast %37 : vector<8x8xbf16> to vector<1x8x8xbf16>
    tpu.vector_store %arg21[%c1, %c0_17, %c0_18], %40 {strides = array<i32>} : memref<4x8x8xbf16, #tpu.memory_space<vmem>>, vector<1x8x8xbf16>,
    %41 = vector.extract_strided_slice %32 {offsets = [0, 16], sizes = [8, 8], strides = [1, 1]} : vector<8x32xbf16> to vector<8x8xbf16>
    %c2 = arith.constant 2 : index
    %c0_19 = arith.constant 0 : index
    %c0_20 = arith.constant 0 : index
    %42 = vector.load %arg21[%c2, %c0_19, %c0_20] : memref<4x8x8xbf16, #tpu.memory_space<vmem>>, vector<1x8x8xbf16>
    %43 = vector.shape_cast %42 : vector<1x8x8xbf16> to vector<8x8xbf16>
    %44 = vector.shape_cast %41 : vector<8x8xbf16> to vector<1x8x8xbf16>
    tpu.vector_store %arg21[%c2, %c0_19, %c0_20], %44 {strides = array<i32>} : memref<4x8x8xbf16, #tpu.memory_space<vmem>>, vector<1x8x8xbf16>,
    %45 = vector.extract_strided_slice %32 {offsets = [0, 24], sizes = [8, 8], strides = [1, 1]} : vector<8x32xbf16> to vector<8x8xbf16>
    %c3 = arith.constant 3 : index
    %c0_21 = arith.constant 0 : index
    %c0_22 = arith.constant 0 : index
    %46 = vector.load %arg21[%c3, %c0_21, %c0_22] : memref<4x8x8xbf16, #tpu.memory_space<vmem>>, vector<1x8x8xbf16>
    %47 = vector.shape_cast %46 : vector<1x8x8xbf16> to vector<8x8xbf16>
    %48 = vector.shape_cast %45 : vector<8x8xbf16> to vector<1x8x8xbf16>
    tpu.vector_store %arg21[%c3, %c0_21, %c0_22], %48 {strides = array<i32>} : memref<4x8x8xbf16, #tpu.memory_space<vmem>>, vector<1x8x8xbf16>,
    %c0_23 = arith.constant 0 : index
    %c0_24 = arith.constant 0 : index
    %c0_25 = arith.constant 0 : index
    %49 = vector.load %arg21[%c0_23, %c0_24, %c0_25] : memref<4x8x8xbf16, #tpu.memory_space<vmem>>, vector<4x8x8xbf16>
    %c0_26 = arith.constant 0 : index
    %c0_27 = arith.constant 0 : index
    %c0_28 = arith.constant 0 : index
    %50 = vector.load %arg19[%c0_26, %c0_27, %c0_28] : memref<4x8x8xbf16, #tpu.memory_space<vmem>>, vector<4x8x8xbf16>
    "tpu.trace_start"() <{level = 10 : i32, message = "hqd,hnd->hqn"}> : () -> ()
    %cst_29 = arith.constant dense<0.000000e+00> : vector<4x8x8xf32>
    %51 = tpu.matmul %49, %50, %cst_29 {dimension_numbers = #tpu.dot_dimension_numbers<[2], [2], [1], [1], [0, 0, 0, 1, 1, 1], [0], [0]>} : vector<4x8x8xbf16>, vector<4x8x8xbf16>, vector<4x8x8xf32> -> vector<4x8x8xf32>
    "tpu.trace_stop"() : () -> ()
    %cst_30 = arith.constant dense<0xFF800000> : vector<4x8xf32>
    %52 = vector.multi_reduction <maximumf>, %51, %cst_30 [2] : vector<4x8x8xf32> to vector<4x8xf32>
    %53 = vector.shape_cast %52 : vector<4x8xf32> to vector<4x8x1xf32>
    %54 = vector.broadcast %53 : vector<4x8x1xf32> to vector<4x8x8xf32>
    %55 = arith.subf %51, %54 : vector<4x8x8xf32>
    %56 = math.exp %55 : vector<4x8x8xf32>
    %cst_31 = arith.constant dense<0.000000e+00> : vector<4x8xf32>
    %57 = vector.multi_reduction <add>, %56, %cst_31 [2] : vector<4x8x8xf32> to vector<4x8xf32>
    %58 = vector.shape_cast %57 : vector<4x8xf32> to vector<4x8x1xf32>
    %59 = tpu.reciprocal %58 {approx = true} : vector<4x8x1xf32> -> vector<4x8x1xf32>
    %60 = vector.broadcast %59 : vector<4x8x1xf32> to vector<4x8x8xf32>
    %61 = arith.mulf %56, %60 : vector<4x8x8xf32>
    %c0_32 = arith.constant 0 : index
    %c0_33 = arith.constant 0 : index
    %c0_34 = arith.constant 0 : index
    %c0_35 = arith.constant 0 : index
    %62 = vector.load %arg18[%c0_32, %c0_33, %c0_34, %c0_35] : memref<1x4x8x8xf32, #tpu.memory_space<vmem>>, vector<1x4x8x8xf32>
    %63 = vector.shape_cast %62 : vector<1x4x8x8xf32> to vector<4x8x8xf32>
    %64 = vector.shape_cast %61 : vector<4x8x8xf32> to vector<1x4x8x8xf32>
    tpu.vector_store %arg18[%c0_32, %c0_33, %c0_34, %c0_35], %64 {strides = array<i32>} : memref<1x4x8x8xf32, #tpu.memory_space<vmem>>, vector<1x4x8x8xf32>,
    %65 = arith.truncf %61 : vector<4x8x8xf32> to vector<4x8x8xbf16>
    %c0_36 = arith.constant 0 : index
    %c0_37 = arith.constant 0 : index
    %c0_38 = arith.constant 0 : index
    %66 = vector.load %arg20[%c0_36, %c0_37, %c0_38] : memref<4x8x8xbf16, #tpu.memory_space<vmem>>, vector<4x8x8xbf16>
    "tpu.trace_start"() <{level = 10 : i32, message = "hqn,hnd->hqd"}> : () -> ()
    %cst_39 = arith.constant dense<0.000000e+00> : vector<4x8x8xf32>
    %67 = tpu.matmul %65, %66, %cst_39 {dimension_numbers = #tpu.dot_dimension_numbers<[2], [1], [1], [2], [0, 0, 0, 1, 1, 2], [0], [0]>} : vector<4x8x8xbf16>, vector<4x8x8xbf16>, vector<4x8x8xf32> -> vector<4x8x8xf32>
    "tpu.trace_stop"() : () -> ()
    %68 = arith.truncf %67 : vector<4x8x8xf32> to vector<4x8x8xbf16>
    %69 = vector.extract_strided_slice %68 {offsets = [0, 0, 0], sizes = [1, 8, 8], strides = [1, 1, 1]} : vector<4x8x8xbf16> to vector<1x8x8xbf16>
    %70 = vector.shape_cast %69 : vector<1x8x8xbf16> to vector<8x8xbf16>
    %c0_40 = arith.constant 0 : index
    %c0_41 = arith.constant 0 : index
    %71 = vector.load %arg22[%c0_40, %c0_41] : memref<8x32xbf16, #tpu.memory_space<vmem>>, vector<8x8xbf16>
    tpu.vector_store %arg22[%c0_40, %c0_41], %70 {strides = array<i32>} : memref<8x32xbf16, #tpu.memory_space<vmem>>, vector<8x8xbf16>,
    %72 = vector.extract_strided_slice %68 {offsets = [1, 0, 0], sizes = [1, 8, 8], strides = [1, 1, 1]} : vector<4x8x8xbf16> to vector<1x8x8xbf16>
    %73 = vector.shape_cast %72 : vector<1x8x8xbf16> to vector<8x8xbf16>
    %c0_42 = arith.constant 0 : index
    %c8 = arith.constant 8 : index
    %74 = vector.load %arg22[%c0_42, %c8] : memref<8x32xbf16, #tpu.memory_space<vmem>>, vector<8x8xbf16>
    tpu.vector_store %arg22[%c0_42, %c8], %73 {strides = array<i32>} : memref<8x32xbf16, #tpu.memory_space<vmem>>, vector<8x8xbf16>,
    %75 = vector.extract_strided_slice %68 {offsets = [2, 0, 0], sizes = [1, 8, 8], strides = [1, 1, 1]} : vector<4x8x8xbf16> to vector<1x8x8xbf16>
    %76 = vector.shape_cast %75 : vector<1x8x8xbf16> to vector<8x8xbf16>
    %c0_43 = arith.constant 0 : index
    %c16 = arith.constant 16 : index
    %77 = vector.load %arg22[%c0_43, %c16] : memref<8x32xbf16, #tpu.memory_space<vmem>>, vector<8x8xbf16>
    tpu.vector_store %arg22[%c0_43, %c16], %76 {strides = array<i32>} : memref<8x32xbf16, #tpu.memory_space<vmem>>, vector<8x8xbf16>,
    %78 = vector.extract_strided_slice %68 {offsets = [3, 0, 0], sizes = [1, 8, 8], strides = [1, 1, 1]} : vector<4x8x8xbf16> to vector<1x8x8xbf16>
    %79 = vector.shape_cast %78 : vector<1x8x8xbf16> to vector<8x8xbf16>
    %c0_44 = arith.constant 0 : index
    %c24 = arith.constant 24 : index
    %80 = vector.load %arg22[%c0_44, %c24] : memref<8x32xbf16, #tpu.memory_space<vmem>>, vector<8x8xbf16>
    tpu.vector_store %arg22[%c0_44, %c24], %79 {strides = array<i32>} : memref<8x32xbf16, #tpu.memory_space<vmem>>, vector<8x8xbf16>,
    %c0_45 = arith.constant 0 : index
    %c0_46 = arith.constant 0 : index
    %81 = vector.load %arg22[%c0_45, %c0_46] : memref<8x32xbf16, #tpu.memory_space<vmem>>, vector<8x32xbf16>
    %c0_47 = arith.constant 0 : index
    %c0_48 = arith.constant 0 : index
    %82 = vector.load %arg9[%c0_47, %c0_48] : memref<32x32xbf16, #tpu.memory_space<vmem>>, vector<32x32xbf16>
    %cst_49 = arith.constant dense<0.000000e+00> : vector<8x32xf32>
    %83 = tpu.matmul %81, %82, %cst_49 {dimension_numbers = #tpu.dot_dimension_numbers<[1], [0], [0], [1], [0, 0, 1, 1], [], []>} : vector<8x32xbf16>, vector<32x32xbf16>, vector<8x32xf32> -> vector<8x32xf32>
    %c0_50 = arith.constant 0 : index
    %c0_51 = arith.constant 0 : index
    %84 = vector.load %arg10[%c0_50, %c0_51] : memref<1x32xf32, #tpu.memory_space<vmem>>, vector<1x32xf32>
    %85 = vector.broadcast %84 : vector<1x32xf32> to vector<8x32xf32>
    %86 = arith.addf %83, %85 : vector<8x32xf32>
    %87 = arith.addf %1, %86 : vector<8x32xf32>
    %c0_52 = arith.constant 0 : index
    %c0_53 = arith.constant 0 : index
    %88 = vector.load %arg11[%c0_52, %c0_53] : memref<1x32xf32, #tpu.memory_space<vmem>>, vector<1x32xf32>
    %c0_54 = arith.constant 0 : index
    %c0_55 = arith.constant 0 : index
    %89 = vector.load %arg12[%c0_54, %c0_55] : memref<1x32xf32, #tpu.memory_space<vmem>>, vector<1x32xf32>
    %cst_56 = arith.constant dense<0.000000e+00> : vector<8xf32>
    %90 = vector.multi_reduction <add>, %87, %cst_56 [1] : vector<8x32xf32> to vector<8xf32>
    %91 = vector.shape_cast %90 : vector<8xf32> to vector<8x1xf32>
    %92 = arith.mulf %87, %87 : vector<8x32xf32>
    %cst_57 = arith.constant dense<0.000000e+00> : vector<8xf32>
    %93 = vector.multi_reduction <add>, %92, %cst_57 [1] : vector<8x32xf32> to vector<8xf32>
    %94 = vector.shape_cast %93 : vector<8xf32> to vector<8x1xf32>
    %cst_58 = arith.constant 3.125000e-02 : f32
    %95 = vector.broadcast %cst_58 : f32 to vector<8x1xf32>
    %96 = arith.mulf %91, %95 : vector<8x1xf32>
    %cst_59 = arith.constant 3.125000e-02 : f32
    %97 = vector.broadcast %cst_59 : f32 to vector<8x1xf32>
    %98 = arith.mulf %94, %97 : vector<8x1xf32>
    %99 = arith.mulf %96, %96 : vector<8x1xf32>
    %100 = arith.subf %98, %99 : vector<8x1xf32>
    %101 = vector.broadcast %96 : vector<8x1xf32> to vector<8x32xf32>
    %102 = arith.subf %87, %101 : vector<8x32xf32>
    %cst_60 = arith.constant 9.99999974E-6 : f32
    %103 = vector.broadcast %cst_60 : f32 to vector<8x1xf32>
    %104 = arith.addf %100, %103 : vector<8x1xf32>
    %105 = math.rsqrt %104 : vector<8x1xf32>
    %106 = vector.broadcast %105 : vector<8x1xf32> to vector<8x32xf32>
    %107 = arith.mulf %102, %106 : vector<8x32xf32>
    %108 = vector.broadcast %88 : vector<1x32xf32> to vector<8x32xf32>
    %109 = arith.mulf %107, %108 : vector<8x32xf32>
    %110 = vector.broadcast %89 : vector<1x32xf32> to vector<8x32xf32>
    %111 = arith.addf %109, %110 : vector<8x32xf32>
    %112 = arith.truncf %111 : vector<8x32xf32> to vector<8x32xbf16>
    %c0_61 = arith.constant 0 : index
    %c0_62 = arith.constant 0 : index
    %113 = vector.load %arg13[%c0_61, %c0_62] : memref<32x128xbf16, #tpu.memory_space<vmem>>, vector<32x128xbf16>
    %cst_63 = arith.constant dense<0.000000e+00> : vector<8x128xf32>
    %114 = tpu.matmul %112, %113, %cst_63 {dimension_numbers = #tpu.dot_dimension_numbers<[1], [0], [0], [1], [0, 0, 1, 1], [], []>} : vector<8x32xbf16>, vector<32x128xbf16>, vector<8x128xf32> -> vector<8x128xf32>
    %c0_64 = arith.constant 0 : index
    %c0_65 = arith.constant 0 : index
    %115 = vector.load %arg14[%c0_64, %c0_65] : memref<1x128xf32, #tpu.memory_space<vmem>>, vector<1x128xf32>
    %116 = vector.broadcast %115 : vector<1x128xf32> to vector<8x128xf32>
    %117 = arith.addf %114, %116 : vector<8x128xf32>
    %cst_66 = arith.constant 5.000000e-01 : f32
    %118 = vector.broadcast %cst_66 : f32 to vector<8x128xf32>
    %119 = arith.mulf %118, %117 : vector<8x128xf32>
    %cst_67 = arith.constant 0.707106769 : f32
    %120 = vector.broadcast %cst_67 : f32 to vector<8x128xf32>
    %121 = arith.mulf %117, %120 : vector<8x128xf32>
    %122 = math.erf %121 : vector<8x128xf32>
    %cst_68 = arith.constant 1.000000e+00 : f32
    %123 = vector.broadcast %cst_68 : f32 to vector<8x128xf32>
    %124 = arith.addf %123, %122 : vector<8x128xf32>
    %125 = arith.mulf %119, %124 : vector<8x128xf32>
    %126 = arith.truncf %125 : vector<8x128xf32> to vector<8x128xbf16>
    %c0_69 = arith.constant 0 : index
    %c0_70 = arith.constant 0 : index
    %127 = vector.load %arg15[%c0_69, %c0_70] : memref<128x32xbf16, #tpu.memory_space<vmem>>, vector<128x32xbf16>
    %cst_71 = arith.constant dense<0.000000e+00> : vector<8x32xf32>
    %128 = tpu.matmul %126, %127, %cst_71 {dimension_numbers = #tpu.dot_dimension_numbers<[1], [0], [0], [1], [0, 0, 1, 1], [], []>} : vector<8x128xbf16>, vector<128x32xbf16>, vector<8x32xf32> -> vector<8x32xf32>
    %c0_72 = arith.constant 0 : index
    %c0_73 = arith.constant 0 : index
    %129 = vector.load %arg16[%c0_72, %c0_73] : memref<1x32xf32, #tpu.memory_space<vmem>>, vector<1x32xf32>
    %130 = vector.broadcast %129 : vector<1x32xf32> to vector<8x32xf32>
    %131 = arith.addf %128, %130 : vector<8x32xf32>
    %132 = arith.addf %87, %131 : vector<8x32xf32>
    %c0_74 = arith.constant 0 : index
    %c0_75 = arith.constant 0 : index
    %c0_76 = arith.constant 0 : index
    %133 = vector.load %arg17[%c0_74, %c0_75, %c0_76] : memref<1x8x32xf32, #tpu.memory_space<vmem>>, vector<1x8x32xf32>
    %134 = vector.shape_cast %133 : vector<1x8x32xf32> to vector<8x32xf32>
    %135 = vector.shape_cast %132 : vector<8x32xf32> to vector<1x8x32xf32>
    tpu.vector_store %arg17[%c0_74, %c0_75, %c0_76], %135 {strides = array<i32>} : memref<1x8x32xf32, #tpu.memory_space<vmem>>, vector<1x8x32xf32>,
    return
  }
  func.func @transform_0(%arg0: i32, %arg1: i32) -> (i32, i32, i32) {
    %c0_i32 = arith.constant 0 : i32
    %c0_i32_0 = arith.constant 0 : i32
    return %arg0, %arg1, %c0_i32 : i32, i32, i32
  }
  func.func @transform_1(%arg0: i32, %arg1: i32) -> (i32, i32, i32) {
    %c0_i32 = arith.constant 0 : i32
    %c0_i32_0 = arith.constant 0 : i32
    %c0_i32_1 = arith.constant 0 : i32
    return %arg0, %c0_i32, %c0_i32_0 : i32, i32, i32
  }
  func.func @transform_2(%arg0: i32, %arg1: i32) -> (i32, i32) {
    %c0_i32 = arith.constant 0 : i32
    %c0_i32_0 = arith.constant 0 : i32
    %c0_i32_1 = arith.constant 0 : i32
    return %c0_i32, %c0_i32_0 : i32, i32
  }
  func.func @transform_3(%arg0: i32, %arg1: i32) -> (i32, i32) {
    %c0_i32 = arith.constant 0 : i32
    %c0_i32_0 = arith.constant 0 : i32
    %c0_i32_1 = arith.constant 0 : i32
    return %c0_i32, %c0_i32_0 : i32, i32
  }
  func.func @transform_4(%arg0: i32, %arg1: i32) -> (i32, i32) {
    %c0_i32 = arith.constant 0 : i32
    %c0_i32_0 = arith.constant 0 : i32
    %c0_i32_1 = arith.constant 0 : i32
    return %c0_i32, %c0_i32_0 : i32, i32
  }
  func.func @transform_5(%arg0: i32, %arg1: i32) -> (i32, i32) {
    %c0_i32 = arith.constant 0 : i32
    %c0_i32_0 = arith.constant 0 : i32
    %c0_i32_1 = arith.constant 0 : i32
    return %c0_i32, %c0_i32_0 : i32, i32
  }
  func.func @transform_6(%arg0: i32, %arg1: i32) -> (i32, i32) {
    %c0_i32 = arith.constant 0 : i32
    %c0_i32_0 = arith.constant 0 : i32
    %c0_i32_1 = arith.constant 0 : i32
    return %c0_i32, %c0_i32_0 : i32, i32
  }
  func.func @transform_7(%arg0: i32, %arg1: i32) -> (i32, i32) {
    %c0_i32 = arith.constant 0 : i32
    %c0_i32_0 = arith.constant 0 : i32
    %c0_i32_1 = arith.constant 0 : i32
    return %c0_i32, %c0_i32_0 : i32, i32
  }
  func.func @transform_8(%arg0: i32, %arg1: i32) -> (i32, i32) {
    %c0_i32 = arith.constant 0 : i32
    %c0_i32_0 = arith.constant 0 : i32
    %c0_i32_1 = arith.constant 0 : i32
    return %c0_i32, %c0_i32_0 : i32, i32
  }
  func.func @transform_9(%arg0: i32, %arg1: i32) -> (i32, i32) {
    %c0_i32 = arith.constant 0 : i32
    %c0_i32_0 = arith.constant 0 : i32
    %c0_i32_1 = arith.constant 0 : i32
    return %c0_i32, %c0_i32_0 : i32, i32
  }
  func.func @transform_10(%arg0: i32, %arg1: i32) -> (i32, i32) {
    %c0_i32 = arith.constant 0 : i32
    %c0_i32_0 = arith.constant 0 : i32
    %c0_i32_1 = arith.constant 0 : i32
    return %c0_i32, %c0_i32_0 : i32, i32
  }
  func.func @transform_11(%arg0: i32, %arg1: i32) -> (i32, i32) {
    %c0_i32 = arith.constant 0 : i32
    %c0_i32_0 = arith.constant 0 : i32
    %c0_i32_1 = arith.constant 0 : i32
    return %c0_i32, %c0_i32_0 : i32, i32
  }
  func.func @transform_12(%arg0: i32, %arg1: i32) -> (i32, i32) {
    %c0_i32 = arith.constant 0 : i32
    %c0_i32_0 = arith.constant 0 : i32
    %c0_i32_1 = arith.constant 0 : i32
    return %c0_i32, %c0_i32_0 : i32, i32
  }
  func.func @transform_13(%arg0: i32, %arg1: i32) -> (i32, i32) {
    %c0_i32 = arith.constant 0 : i32
    %c0_i32_0 = arith.constant 0 : i32
    %c0_i32_1 = arith.constant 0 : i32
    return %c0_i32, %c0_i32_0 : i32, i32
  }
  func.func @transform_14(%arg0: i32, %arg1: i32) -> (i32, i32) {
    %c0_i32 = arith.constant 0 : i32
    %c0_i32_0 = arith.constant 0 : i32
    %c0_i32_1 = arith.constant 0 : i32
    return %c0_i32, %c0_i32_0 : i32, i32
  }
  func.func @transform_15(%arg0: i32, %arg1: i32) -> (i32, i32, i32) {
    %c0_i32 = arith.constant 0 : i32
    %c0_i32_0 = arith.constant 0 : i32
    return %arg0, %arg1, %c0_i32 : i32, i32, i32
  }
  func.func @transform_16(%arg0: i32, %arg1: i32) -> (i32, i32, i32, i32) {
    %c0_i32 = arith.constant 0 : i32
    %c0_i32_0 = arith.constant 0 : i32
    %c0_i32_1 = arith.constant 0 : i32
    return %arg0, %c0_i32, %arg1, %c0_i32_0 : i32, i32, i32, i32
  }
}

</mosaic_0001>

<llo_original>
// kernel: tpu_custom_call.1
$region0: #{tpu_custom_call.1}
  #allocation0 [shape = 'u32[]', space=smem, size = 0x4, offset = 0x4, fixed_abs, tag = 'smem constant byte address 0x4 - core index']
  #allocation1 [shape = 'u32[144,128]{1,0:T(1,128)}', space=vmem, size = 0x12000, scoped, tag = 'internal scratch']
  #allocation2 [shape = 'bf16[4,8,8]{2,1,0:T(8,128)(2,1)}', space=vmem, size = 0x2000, scoped, tag = 'scratch operand']
  #allocation3 [shape = 'bf16[4,8,8]{2,1,0:T(8,128)(2,1)}', space=vmem, size = 0x2000, scoped, tag = 'scratch operand']
  #allocation4 [shape = 'bf16[4,8,8]{2,1,0:T(8,128)(2,1)}', space=vmem, size = 0x2000, scoped, tag = 'scratch operand']
  #allocation5 [shape = 'bf16[8,32]{1,0:T(8,128)(2,1)}', space=vmem, size = 0x800, scoped, tag = 'scratch operand']
  %s0 = inlined_call_operand.hbm [shape: f32[2,8,32], index: 0, kind: input, shape index: {}]
  %s1 = inlined_call_operand.hbm [shape: f32[2,8,32], index: 1, kind: input, shape index: {}]
  %s2 = inlined_call_operand.hbm [shape: f32[1,32], index: 2, kind: input, shape index: {}]
  %s3 = inlined_call_operand.hbm [shape: f32[1,32], index: 3, kind: input, shape index: {}]
  %s4 = inlined_call_operand.hbm [shape: bf16[32,32], index: 4, kind: input, shape index: {}]
  %s5 = inlined_call_operand.hbm [shape: bf16[32,32], index: 5, kind: input, shape index: {}]
  %s6 = inlined_call_operand.hbm [shape: bf16[32,32], index: 6, kind: input, shape index: {}]
  %s7 = inlined_call_operand.hbm [shape: bf16[32,32], index: 7, kind: input, shape index: {}]
  %s8 = inlined_call_operand.hbm [shape: f32[1,32], index: 8, kind: input, shape index: {}]
  %s9 = inlined_call_operand.hbm [shape: f32[1,32], index: 9, kind: input, shape index: {}]
  %s10 = inlined_call_operand.hbm [shape: f32[1,32], index: 10, kind: input, shape index: {}]
  %s11 = inlined_call_operand.hbm [shape: bf16[32,128], index: 11, kind: input, shape index: {}]
  %s12 = inlined_call_operand.hbm [shape: f32[1,128], index: 12, kind: input, shape index: {}]
  %s13 = inlined_call_operand.hbm [shape: bf16[128,32], index: 13, kind: input, shape index: {}]
  %s14 = inlined_call_operand.hbm [shape: f32[1,32], index: 14, kind: input, shape index: {}]
  %s15 = inlined_call_operand.hbm [shape: f32[2,8,32], index: 15, kind: output, shape index: {0}]
  %s16 = inlined_call_operand.hbm [shape: f32[2,4,8,8], index: 16, kind: output, shape index: {1}]
  %17 = xla_tuple %s15, %s16
  %s18 = sld [smem:[#allocation0]]
  $region165: #{tpu_custom_call.1} parent=0
    _
  %s20 = ssub.s32 1, %s18
  %s21 = scalar_select 0, %s20, %s18
  $region1: #{tpu_custom_call.1} parent=0
    #allocation6 [shape = 'u8[8192]{0}', space=vmem, size = 0x2000, scoped, tag = 'input window, operand 0']
    #allocation7 [shape = 's32[2]{0}', space=sflag, size = 0x8, scoped, tag = 'scoped memory for tpu_custom_call.1']
    #allocation8 [shape = 's32[2]{0}', space=sflag, size = 0x8, scoped, tag = 'scoped memory for tpu_custom_call.1']
    #allocation9 [shape = 'u8[8192]{0}', space=vmem, size = 0x2000, scoped, tag = 'input window, operand 1']
    #allocation10 [shape = 's32[2]{0}', space=sflag, size = 0x8, scoped, tag = 'scoped memory for tpu_custom_call.1']
    #allocation11 [shape = 'u8[512]{0}', space=vmem, size = 0x400, scoped, tag = 'input window, operand 2, single buffered']
    #allocation12 [shape = 'u8[512]{0}', space=vmem, size = 0x400, scoped, tag = 'input window, operand 3, single buffered']
    #allocation13 [shape = 's32[1]{0}', space=sflag, size = 0x4, scoped, tag = 'scoped memory for tpu_custom_call.1']
    #allocation14 [shape = 'u8[8192]{0}', space=vmem, size = 0x2000, scoped, tag = 'input window, operand 4, single buffered']
    #allocation15 [shape = 'u8[8192]{0}', space=vmem, size = 0x2000, scoped, tag = 'input window, operand 5, single buffered']
    #allocation16 [shape = 's32[1]{0}', space=sflag, size = 0x4, scoped, tag = 'scoped memory for tpu_custom_call.1']
    #allocation17 [shape = 'u8[8192]{0}', space=vmem, size = 0x2000, scoped, tag = 'input window, operand 6, single buffered']
    #allocation18 [shape = 'u8[8192]{0}', space=vmem, size = 0x2000, scoped, tag = 'input window, operand 7, single buffered']
    #allocation19 [shape = 's32[1]{0}', space=sflag, size = 0x4, scoped, tag = 'scoped memory for tpu_custom_call.1']
    #allocation20 [shape = 'u8[512]{0}', space=vmem, size = 0x400, scoped, tag = 'input window, operand 8, single buffered']
    #allocation21 [shape = 'u8[512]{0}', space=vmem, size = 0x400, scoped, tag = 'input window, operand 9, single buffered']
    #allocation22 [shape = 's32[1]{0}', space=sflag, size = 0x4, scoped, tag = 'scoped memory for tpu_custom_call.1']
    #allocation23 [shape = 'u8[512]{0}', space=vmem, size = 0x400, scoped, tag = 'input window, operand 10, single buffered']
    #allocation24 [shape = 'u8[8192]{0}', space=vmem, size = 0x2000, scoped, tag = 'input window, operand 11, single buffered']
    #allocation25 [shape = 's32[1]{0}', space=sflag, size = 0x4, scoped, tag = 'scoped memory for tpu_custom_call.1']
    #allocation26 [shape = 'u8[512]{0}', space=vmem, size = 0x400, scoped, tag = 'input window, operand 12, single buffered']
    #allocation27 [shape = 'u8[32768]{0}', space=vmem, size = 0x8000, scoped, tag = 'input window, operand 13, single buffered']
    #allocation28 [shape = 's32[1]{0}', space=sflag, size = 0x4, scoped, tag = 'scoped memory for tpu_custom_call.1']
    #allocation29 [shape = 'u8[512]{0}', space=vmem, size = 0x400, scoped, tag = 'input window, operand 14, single buffered']
    #allocation30 [shape = 'u8[8192]{0}', space=vmem, size = 0x2000, scoped, tag = 'output window, operand 0']
    #allocation31 [shape = 'u8[32768]{0}', space=vmem, size = 0x8000, scoped, tag = 'output window, operand 1']
    #allocation32 [shape = 's32[2]{0}', space=sflag, size = 0x8, scoped, tag = 'scoped memory for tpu_custom_call.1']
    %22 = vsyncpa [#allocation7], 0
    %s23 = scalar_lea.sflag [#allocation7], 1
    %24 = vsyncpa %s23, 0
    %25 = vsyncpa [#allocation10], 0
    %s26 = scalar_lea.sflag [#allocation10], 1
    %27 = vsyncpa %s26, 0
    %28 = vsyncpa [#allocation13], 0
    %29 = vsyncpa [#allocation16], 0
    %30 = vsyncpa [#allocation19], 0
    %31 = vsyncpa [#allocation22], 0
    %32 = vsyncpa [#allocation25], 0
    %33 = vsyncpa [#allocation28], 0
    %34 = vsyncpa [#allocation8], 0
    %s35 = scalar_lea.sflag [#allocation8], 1
    %36 = vsyncpa %s35, 0
    %37 = vsyncpa [#allocation32], 0
    %s38 = scalar_lea.sflag [#allocation32], 1
    %39 = vsyncpa %s38, 0
    loop: start=0, step=1, limit=4
    $region2: #{tpu_custom_call.1} parent=1 // loop_pre_header
      _
    $region3: #{tpu_custom_call.1} parent=1 // loop_header
      %s41 = sphi 0, %s45
      %p42 = scmp.ge.s32.totalorder %s41, 4
      %s48 = sphi 0, %s60
      %s49 = sphi 0, %s56
      %s50 = sphi 0, %s48
      %s51 = sphi 0, %s49
      %s52 = sphi 0, %s50
      %s53 = sphi 0, %s51
      %s65 = sphi 0, %s67
      %s68 = sphi 0, %s65
      %s69 = sphi 0, %s68
      %s85 = sphi 0, %s69
      %s91 = sphi 0, %s93
      %s94 = sphi 0, %s91
      %s95 = sphi 0, %s94
      %s111 = sphi 0, %s95
      %s115 = sphi 0, %s115
      %s117 = sphi 0, %s115
      %s118 = sphi 0, %s117
      %s132 = sphi 0, %s118
      %s136 = sphi 0, %s136
      %s138 = sphi 0, %s136
      %s139 = sphi 0, %s138
      %s153 = sphi 0, %s139
      %s157 = sphi 0, %s157
      %s159 = sphi 0, %s157
      %s160 = sphi 0, %s159
      %s174 = sphi 0, %s160
      %s178 = sphi 0, %s178
      %s180 = sphi 0, %s178
      %s181 = sphi 0, %s180
      %s195 = sphi 0, %s181
      %s199 = sphi 0, %s199
      %s201 = sphi 0, %s199
      %s202 = sphi 0, %s201
      %s216 = sphi 0, %s202
      %s220 = sphi 0, %s220
      %s222 = sphi 0, %s220
      %s223 = sphi 0, %s222
      %s237 = sphi 0, %s223
      %s241 = sphi 0, %s241
      %s243 = sphi 0, %s241
      %s244 = sphi 0, %s243
      %s258 = sphi 0, %s244
      %s262 = sphi 0, %s262
      %s264 = sphi 0, %s262
      %s265 = sphi 0, %s264
      %s279 = sphi 0, %s265
      %s283 = sphi 0, %s283
      %s285 = sphi 0, %s283
      %s286 = sphi 0, %s285
      %s300 = sphi 0, %s286
      %s304 = sphi 0, %s304
      %s306 = sphi 0, %s304
      %s307 = sphi 0, %s306
      %s321 = sphi 0, %s307
      %s325 = sphi 0, %s325
      %s327 = sphi 0, %s325
      %s328 = sphi 0, %s327
      %s342 = sphi 0, %s328
      %s346 = sphi 0, %s346
      %s348 = sphi 0, %s346
      %s349 = sphi 0, %s348
      %s363 = sphi 0, %s349
      %s367 = sphi 0, %s367
      %s369 = sphi 0, %s367
      %s370 = sphi 0, %s369
      %s384 = sphi 0, %s370
      %s392 = sphi 0, %s394
      %s395 = sphi 0, %s392
      %s396 = sphi 0, %s395
      %s412 = sphi 0, %s396
      %s420 = sphi 0, %s422
      %s423 = sphi 0, %s420
      %s424 = sphi 0, %s423
      %s440 = sphi 0, %s424
    $region4: #{tpu_custom_call.1} parent=1 // loop_header_branch
      %44 = sbr.rel (%p42) target = $region8
    $region5: #{tpu_custom_call.1} parent=1 // loop_body
      %s46 = ssub.s32 %s41, 1
      %s47 = ssub.s32 %s41, 2
      %s54 = sadd.s32 1, %s49
      %p55 = scmp.ge.s32.totalorder %s54, 1
      %s56 = scalar_select %p55, 0, %s54
      %s57 = sadd.s32 1, %s48
      %s58 = scalar_select %p55, %s57, %s48
      %p59 = scmp.ge.s32.totalorder %s58, 2
      %s60 = scalar_select %p59, 0, %s58
      %s61 = ssub.s32 %s48, %s60
      %s62 = ssub.s32 %s49, %s56
      %s63 = sor.u32 %s61, %s62
      %p64 = scmp.eq.s32.totalorder %s63, 0
      %s66 = sadd.s32 %s65, 1
      %s67 = scalar_select %p64, %s65, %s66
      %p70 = pneg %p64
      %p71 = scmp.eq.s32.totalorder %s41, 1
      %p72 = por %p70, %p71
      %p73 = scmp.ne.s32.totalorder %s65, %s68
      %p74 = scmp.eq.s32.totalorder %s41, 0
      %p75 = por %p73, %p74
      %p76 = scmp.ne.s32.totalorder %s65, %s68
      %p77 = scmp.eq.s32.totalorder %s46, 1
      %p78 = por %p76, %p77
      %p79 = scmp.ne.s32.totalorder %s68, %s69
      %p80 = scmp.eq.s32.totalorder %s46, 0
      %p81 = por %p79, %p80
      %p82 = scmp.ne.s32.totalorder %s68, %s69
      %p83 = scmp.eq.s32.totalorder %s47, 1
      %p84 = por %p82, %p83
      %p86 = scmp.ne.s32.totalorder %s69, %s85
      %p87 = scmp.eq.s32.totalorder %s47, 0
      %p88 = por %p86, %p87
      %s89 = ssub.s32 %s48, %s60
      %p90 = scmp.eq.s32.totalorder %s89, 0
      %s92 = sadd.s32 %s91, 1
      %s93 = scalar_select %p90, %s91, %s92
      %p96 = pneg %p90
      %p97 = scmp.eq.s32.totalorder %s41, 1
      %p98 = por %p96, %p97
      %p99 = scmp.ne.s32.totalorder %s91, %s94
      %p100 = scmp.eq.s32.totalorder %s41, 0
      %p101 = por %p99, %p100
      %p102 = scmp.ne.s32.totalorder %s91, %s94
      %p103 = scmp.eq.s32.totalorder %s46, 1
      %p104 = por %p102, %p103
      %p105 = scmp.ne.s32.totalorder %s94, %s95
      %p106 = scmp.eq.s32.totalorder %s46, 0
      %p107 = por %p105, %p106
      %p108 = scmp.ne.s32.totalorder %s94, %s95
      %p109 = scmp.eq.s32.totalorder %s47, 1
      %p110 = por %p108, %p109
      %p112 = scmp.ne.s32.totalorder %s95, %s111
      %p113 = scmp.eq.s32.totalorder %s47, 0
      %p114 = por %p112, %p113
      %s116 = sadd.s32 %s115, 1
      %p119 = scmp.eq.s32.totalorder %s41, 1
      %p120 = scmp.ne.s32.totalorder %s115, %s117
      %p121 = scmp.eq.s32.totalorder %s41, 0
      %p122 = por %p120, %p121
      %p123 = scmp.ne.s32.totalorder %s115, %s117
      %p124 = scmp.eq.s32.totalorder %s46, 1
      %p125 = por %p123, %p124
      %p126 = scmp.ne.s32.totalorder %s117, %s118
      %p127 = scmp.eq.s32.totalorder %s46, 0
      %p128 = por %p126, %p127
      %p129 = scmp.ne.s32.totalorder %s117, %s118
      %p130 = scmp.eq.s32.totalorder %s47, 1
      %p131 = por %p129, %p130
      %p133 = scmp.ne.s32.totalorder %s118, %s132
      %p134 = scmp.eq.s32.totalorder %s47, 0
      %p135 = por %p133, %p134
      %s137 = sadd.s32 %s136, 1
      %p140 = scmp.eq.s32.totalorder %s41, 1
      %p141 = scmp.ne.s32.totalorder %s136, %s138
      %p142 = scmp.eq.s32.totalorder %s41, 0
      %p143 = por %p141, %p142
      %p144 = scmp.ne.s32.totalorder %s136, %s138
      %p145 = scmp.eq.s32.totalorder %s46, 1
      %p146 = por %p144, %p145
      %p147 = scmp.ne.s32.totalorder %s138, %s139
      %p148 = scmp.eq.s32.totalorder %s46, 0
      %p149 = por %p147, %p148
      %p150 = scmp.ne.s32.totalorder %s138, %s139
      %p151 = scmp.eq.s32.totalorder %s47, 1
      %p152 = por %p150, %p151
      %p154 = scmp.ne.s32.totalorder %s139, %s153
      %p155 = scmp.eq.s32.totalorder %s47, 0
      %p156 = por %p154, %p155
      %s158 = sadd.s32 %s157, 1
      %p161 = scmp.eq.s32.totalorder %s41, 1
      %p162 = scmp.ne.s32.totalorder %s157, %s159
      %p163 = scmp.eq.s32.totalorder %s41, 0
      %p164 = por %p162, %p163
      %p165 = scmp.ne.s32.totalorder %s157, %s159
      %p166 = scmp.eq.s32.totalorder %s46, 1
      %p167 = por %p165, %p166
      %p168 = scmp.ne.s32.totalorder %s159, %s160
      %p169 = scmp.eq.s32.totalorder %s46, 0
      %p170 = por %p168, %p169
      %p171 = scmp.ne.s32.totalorder %s159, %s160
      %p172 = scmp.eq.s32.totalorder %s47, 1
      %p173 = por %p171, %p172
      %p175 = scmp.ne.s32.totalorder %s160, %s174
      %p176 = scmp.eq.s32.totalorder %s47, 0
      %p177 = por %p175, %p176
      %s179 = sadd.s32 %s178, 1
      %p182 = scmp.eq.s32.totalorder %s41, 1
      %p183 = scmp.ne.s32.totalorder %s178, %s180
      %p184 = scmp.eq.s32.totalorder %s41, 0
      %p185 = por %p183, %p184
      %p186 = scmp.ne.s32.totalorder %s178, %s180
      %p187 = scmp.eq.s32.totalorder %s46, 1
      %p188 = por %p186, %p187
      %p189 = scmp.ne.s32.totalorder %s180, %s181
      %p190 = scmp.eq.s32.totalorder %s46, 0
      %p191 = por %p189, %p190
      %p192 = scmp.ne.s32.totalorder %s180, %s181
      %p193 = scmp.eq.s32.totalorder %s47, 1
      %p194 = por %p192, %p193
      %p196 = scmp.ne.s32.totalorder %s181, %s195
      %p197 = scmp.eq.s32.totalorder %s47, 0
      %p198 = por %p196, %p197
      %s200 = sadd.s32 %s199, 1
      %p203 = scmp.eq.s32.totalorder %s41, 1
      %p204 = scmp.ne.s32.totalorder %s199, %s201
      %p205 = scmp.eq.s32.totalorder %s41, 0
      %p206 = por %p204, %p205
      %p207 = scmp.ne.s32.totalorder %s199, %s201
      %p208 = scmp.eq.s32.totalorder %s46, 1
      %p209 = por %p207, %p208
      %p210 = scmp.ne.s32.totalorder %s201, %s202
      %p211 = scmp.eq.s32.totalorder %s46, 0
      %p212 = por %p210, %p211
      %p213 = scmp.ne.s32.totalorder %s201, %s202
      %p214 = scmp.eq.s32.totalorder %s47, 1
      %p215 = por %p213, %p214
      %p217 = scmp.ne.s32.totalorder %s202, %s216
      %p218 = scmp.eq.s32.totalorder %s47, 0
      %p219 = por %p217, %p218
      %s221 = sadd.s32 %s220, 1
      %p224 = scmp.eq.s32.totalorder %s41, 1
      %p225 = scmp.ne.s32.totalorder %s220, %s222
      %p226 = scmp.eq.s32.totalorder %s41, 0
      %p227 = por %p225, %p226
      %p228 = scmp.ne.s32.totalorder %s220, %s222
      %p229 = scmp.eq.s32.totalorder %s46, 1
      %p230 = por %p228, %p229
      %p231 = scmp.ne.s32.totalorder %s222, %s223
      %p232 = scmp.eq.s32.totalorder %s46, 0
      %p233 = por %p231, %p232
      %p234 = scmp.ne.s32.totalorder %s222, %s223
      %p235 = scmp.eq.s32.totalorder %s47, 1
      %p236 = por %p234, %p235
      %p238 = scmp.ne.s32.totalorder %s223, %s237
      %p239 = scmp.eq.s32.totalorder %s47, 0
      %p240 = por %p238, %p239
      %s242 = sadd.s32 %s241, 1
      %p245 = scmp.eq.s32.totalorder %s41, 1
      %p246 = scmp.ne.s32.totalorder %s241, %s243
      %p247 = scmp.eq.s32.totalorder %s41, 0
      %p248 = por %p246, %p247
      %p249 = scmp.ne.s32.totalorder %s241, %s243
      %p250 = scmp.eq.s32.totalorder %s46, 1
      %p251 = por %p249, %p250
      %p252 = scmp.ne.s32.totalorder %s243, %s244
      %p253 = scmp.eq.s32.totalorder %s46, 0
      %p254 = por %p252, %p253
      %p255 = scmp.ne.s32.totalorder %s243, %s244
      %p256 = scmp.eq.s32.totalorder %s47, 1
      %p257 = por %p255, %p256
      %p259 = scmp.ne.s32.totalorder %s244, %s258
      %p260 = scmp.eq.s32.totalorder %s47, 0
      %p261 = por %p259, %p260
      %s263 = sadd.s32 %s262, 1
      %p266 = scmp.eq.s32.totalorder %s41, 1
      %p267 = scmp.ne.s32.totalorder %s262, %s264
      %p268 = scmp.eq.s32.totalorder %s41, 0
      %p269 = por %p267, %p268
      %p270 = scmp.ne.s32.totalorder %s262, %s264
      %p271 = scmp.eq.s32.totalorder %s46, 1
      %p272 = por %p270, %p271
      %p273 = scmp.ne.s32.totalorder %s264, %s265
      %p274 = scmp.eq.s32.totalorder %s46, 0
      %p275 = por %p273, %p274
      %p276 = scmp.ne.s32.totalorder %s264, %s265
      %p277 = scmp.eq.s32.totalorder %s47, 1
      %p278 = por %p276, %p277
      %p280 = scmp.ne.s32.totalorder %s265, %s279
      %p281 = scmp.eq.s32.totalorder %s47, 0
      %p282 = por %p280, %p281
      %s284 = sadd.s32 %s283, 1
      %p287 = scmp.eq.s32.totalorder %s41, 1
      %p288 = scmp.ne.s32.totalorder %s283, %s285
      %p289 = scmp.eq.s32.totalorder %s41, 0
      %p290 = por %p288, %p289
      %p291 = scmp.ne.s32.totalorder %s283, %s285
      %p292 = scmp.eq.s32.totalorder %s46, 1
      %p293 = por %p291, %p292
      %p294 = scmp.ne.s32.totalorder %s285, %s286
      %p295 = scmp.eq.s32.totalorder %s46, 0
      %p296 = por %p294, %p295
      %p297 = scmp.ne.s32.totalorder %s285, %s286
      %p298 = scmp.eq.s32.totalorder %s47, 1
      %p299 = por %p297, %p298
      %p301 = scmp.ne.s32.totalorder %s286, %s300
      %p302 = scmp.eq.s32.totalorder %s47, 0
      %p303 = por %p301, %p302
      %s305 = sadd.s32 %s304, 1
      %p308 = scmp.eq.s32.totalorder %s41, 1
      %p309 = scmp.ne.s32.totalorder %s304, %s306
      %p310 = scmp.eq.s32.totalorder %s41, 0
      %p311 = por %p309, %p310
      %p312 = scmp.ne.s32.totalorder %s304, %s306
      %p313 = scmp.eq.s32.totalorder %s46, 1
      %p314 = por %p312, %p313
      %p315 = scmp.ne.s32.totalorder %s306, %s307
      %p316 = scmp.eq.s32.totalorder %s46, 0
      %p317 = por %p315, %p316
      %p318 = scmp.ne.s32.totalorder %s306, %s307
      %p319 = scmp.eq.s32.totalorder %s47, 1
      %p320 = por %p318, %p319
      %p322 = scmp.ne.s32.totalorder %s307, %s321
      %p323 = scmp.eq.s32.totalorder %s47, 0
      %p324 = por %p322, %p323
      %s326 = sadd.s32 %s325, 1
      %p329 = scmp.eq.s32.totalorder %s41, 1
      %p330 = scmp.ne.s32.totalorder %s325, %s327
      %p331 = scmp.eq.s32.totalorder %s41, 0
      %p332 = por %p330, %p331
      %p333 = scmp.ne.s32.totalorder %s325, %s327
      %p334 = scmp.eq.s32.totalorder %s46, 1
      %p335 = por %p333, %p334
      %p336 = scmp.ne.s32.totalorder %s327, %s328
      %p337 = scmp.eq.s32.totalorder %s46, 0
      %p338 = por %p336, %p337
      %p339 = scmp.ne.s32.totalorder %s327, %s328
      %p340 = scmp.eq.s32.totalorder %s47, 1
      %p341 = por %p339, %p340
      %p343 = scmp.ne.s32.totalorder %s328, %s342
      %p344 = scmp.eq.s32.totalorder %s47, 0
      %p345 = por %p343, %p344
      %s347 = sadd.s32 %s346, 1
      %p350 = scmp.eq.s32.totalorder %s41, 1
      %p351 = scmp.ne.s32.totalorder %s346, %s348
      %p352 = scmp.eq.s32.totalorder %s41, 0
      %p353 = por %p351, %p352
      %p354 = scmp.ne.s32.totalorder %s346, %s348
      %p355 = scmp.eq.s32.totalorder %s46, 1
      %p356 = por %p354, %p355
      %p357 = scmp.ne.s32.totalorder %s348, %s349
      %p358 = scmp.eq.s32.totalorder %s46, 0
      %p359 = por %p357, %p358
      %p360 = scmp.ne.s32.totalorder %s348, %s349
      %p361 = scmp.eq.s32.totalorder %s47, 1
      %p362 = por %p360, %p361
      %p364 = scmp.ne.s32.totalorder %s349, %s363
      %p365 = scmp.eq.s32.totalorder %s47, 0
      %p366 = por %p364, %p365
      %s368 = sadd.s32 %s367, 1
      %p371 = scmp.eq.s32.totalorder %s41, 1
      %p372 = scmp.ne.s32.totalorder %s367, %s369
      %p373 = scmp.eq.s32.totalorder %s41, 0
      %p374 = por %p372, %p373
      %p375 = scmp.ne.s32.totalorder %s367, %s369
      %p376 = scmp.eq.s32.totalorder %s46, 1
      %p377 = por %p375, %p376
      %p378 = scmp.ne.s32.totalorder %s369, %s370
      %p379 = scmp.eq.s32.totalorder %s46, 0
      %p380 = por %p378, %p379
      %p381 = scmp.ne.s32.totalorder %s369, %s370
      %p382 = scmp.eq.s32.totalorder %s47, 1
      %p383 = por %p381, %p382
      %p385 = scmp.ne.s32.totalorder %s370, %s384
      %p386 = scmp.eq.s32.totalorder %s47, 0
      %p387 = por %p385, %p386
      %s388 = ssub.s32 %s48, %s60
      %s389 = ssub.s32 %s49, %s56
      %s390 = sor.u32 %s388, %s389
      %p391 = scmp.eq.s32.totalorder %s390, 0
      %s393 = sadd.s32 %s392, 1
      %s394 = scalar_select %p391, %s392, %s393
      %p397 = pneg %p391
      %p398 = scmp.eq.s32.totalorder %s41, 1
      %p399 = por %p397, %p398
      %p400 = scmp.ne.s32.totalorder %s392, %s395
      %p401 = scmp.eq.s32.totalorder %s41, 0
      %p402 = por %p400, %p401
      %p403 = scmp.ne.s32.totalorder %s392, %s395
      %p404 = scmp.eq.s32.totalorder %s46, 1
      %p405 = por %p403, %p404
      %p406 = scmp.ne.s32.totalorder %s395, %s396
      %p407 = scmp.eq.s32.totalorder %s46, 0
      %p408 = por %p406, %p407
      %p409 = scmp.ne.s32.totalorder %s395, %s396
      %p410 = scmp.eq.s32.totalorder %s47, 1
      %p411 = por %p409, %p410
      %p413 = scmp.ne.s32.totalorder %s396, %s412
      %p414 = scmp.eq.s32.totalorder %s47, 0
      %p415 = por %p413, %p414
      %s416 = ssub.s32 %s48, %s60
      %s417 = ssub.s32 %s49, %s56
      %s418 = sor.u32 %s416, %s417
      %p419 = scmp.eq.s32.totalorder %s418, 0
      %s421 = sadd.s32 %s420, 1
      %s422 = scalar_select %p419, %s420, %s421
      %p425 = pneg %p419
      %p426 = scmp.eq.s32.totalorder %s41, 1
      %p427 = por %p425, %p426
      %p428 = scmp.ne.s32.totalorder %s420, %s423
      %p429 = scmp.eq.s32.totalorder %s41, 0
      %p430 = por %p428, %p429
      %p431 = scmp.ne.s32.totalorder %s420, %s423
      %p432 = scmp.eq.s32.totalorder %s46, 1
      %p433 = por %p431, %p432
      %p434 = scmp.ne.s32.totalorder %s423, %s424
      %p435 = scmp.eq.s32.totalorder %s46, 0
      %p436 = por %p434, %p435
      %p437 = scmp.ne.s32.totalorder %s423, %s424
      %p438 = scmp.eq.s32.totalorder %s47, 1
      %p439 = por %p437, %p438
      %p441 = scmp.ne.s32.totalorder %s424, %s440
      %p442 = scmp.eq.s32.totalorder %s47, 0
      %p443 = por %p441, %p442
      %p444 = scmp.le.s32.totalorder 1, %s41
      %p445 = scmp.lt.s32.totalorder %s41, 3
      %p446 = pnand %p444, %p445
      %p447 = pneg %p446
      // Predicated region
      $region9: #{tpu_custom_call.1} parent=5 // pred_check
        _
      $region10: #{tpu_custom_call.1} parent=5 // pred_check_branch
        %449 = sbr.rel (%p446) target = $region12
      $region11: #{tpu_custom_call.1} parent=5 // pred_region
        %s450 = ssub.s32 %s41, 1
        // Predicated region
        $region13: #{tpu_custom_call.1} parent=11 // pred_check
          %p451 = pneg %p128
        $region14: #{tpu_custom_call.1} parent=11 // pred_check_branch
          %453 = sbr.rel (%p451) target = $region16
        $region15: #{tpu_custom_call.1} parent=11 // pred_region
          %s455 = ssub.s32 16, 16
          %456 = vsyncadd [#allocation10], %s455
          %s458 = sshll.u32 [#allocation11], 4
          %s459 = int_to_ptr.vmem [resolvable:$true] %s458
          %461 = dma.hbm_to_vmem [thread:$0]  %s2, 16, %s459, [#allocation10]
        $region16: #{tpu_custom_call.1} parent=11 // pred_fallthru
          _
        // Predicated region
        $region17: #{tpu_custom_call.1} parent=11 // pred_check
          %p462 = pneg %p149
        $region18: #{tpu_custom_call.1} parent=11 // pred_check_branch
          %464 = sbr.rel (%p462) target = $region20
        $region19: #{tpu_custom_call.1} parent=11 // pred_region
          %s466 = ssub.s32 16, 16
          %467 = vsyncadd [#allocation13], %s466
          %s469 = sshll.u32 [#allocation12], 4
          %s470 = int_to_ptr.vmem [resolvable:$true] %s469
          %472 = dma.hbm_to_vmem [thread:$0]  %s3, 16, %s470, [#allocation13]
        $region20: #{tpu_custom_call.1} parent=11 // pred_fallthru
          _
        // Predicated region
        $region21: #{tpu_custom_call.1} parent=11 // pred_check
          %p473 = pneg %p170
        $region22: #{tpu_custom_call.1} parent=11 // pred_check_branch
          %475 = sbr.rel (%p473) target = $region24
        $region23: #{tpu_custom_call.1} parent=11 // pred_region
          %s477 = ssub.s32 256, 256
          %478 = vsyncadd [#allocation13], %s477
          %s479 = sshll.u32 [#allocation14], 4
          %s480 = int_to_ptr.vmem [resolvable:$true] %s479
          %485 = dma.hbm_to_vmem [thread:$0]  %s4, 256, %s480, [#allocation13], 64, 64, 4
        $region24: #{tpu_custom_call.1} parent=11 // pred_fallthru
          _
        // Predicated region
        $region25: #{tpu_custom_call.1} parent=11 // pred_check
          %p486 = pneg %p191
        $region26: #{tpu_custom_call.1} parent=11 // pred_check_branch
          %488 = sbr.rel (%p486) target = $region28
        $region27: #{tpu_custom_call.1} parent=11 // pred_region
          %s490 = ssub.s32 256, 256
          %491 = vsyncadd [#allocation16], %s490
          %s492 = sshll.u32 [#allocation15], 4
          %s493 = int_to_ptr.vmem [resolvable:$true] %s492
          %498 = dma.hbm_to_vmem [thread:$0]  %s5, 256, %s493, [#allocation16], 64, 64, 4
        $region28: #{tpu_custom_call.1} parent=11 // pred_fallthru
          _
        // Predicated region
        $region29: #{tpu_custom_call.1} parent=11 // pred_check
          %p499 = pneg %p212
        $region30: #{tpu_custom_call.1} parent=11 // pred_check_branch
          %501 = sbr.rel (%p499) target = $region32
        $region31: #{tpu_custom_call.1} parent=11 // pred_region
          %s503 = ssub.s32 256, 256
          %504 = vsyncadd [#allocation16], %s503
          %s505 = sshll.u32 [#allocation17], 4
          %s506 = int_to_ptr.vmem [resolvable:$true] %s505
          %511 = dma.hbm_to_vmem [thread:$0]  %s6, 256, %s506, [#allocation16], 64, 64, 4
        $region32: #{tpu_custom_call.1} parent=11 // pred_fallthru
          _
        // Predicated region
        $region33: #{tpu_custom_call.1} parent=11 // pred_check
          %p512 = pneg %p233
        $region34: #{tpu_custom_call.1} parent=11 // pred_check_branch
          %514 = sbr.rel (%p512) target = $region36
        $region35: #{tpu_custom_call.1} parent=11 // pred_region
          %s516 = ssub.s32 256, 256
          %517 = vsyncadd [#allocation19], %s516
          %s518 = sshll.u32 [#allocation18], 4
          %s519 = int_to_ptr.vmem [resolvable:$true] %s518
          %524 = dma.hbm_to_vmem [thread:$0]  %s7, 256, %s519, [#allocation19], 64, 64, 4
        $region36: #{tpu_custom_call.1} parent=11 // pred_fallthru
          _
        // Predicated region
        $region37: #{tpu_custom_call.1} parent=11 // pred_check
          %p525 = pneg %p254
        $region38: #{tpu_custom_call.1} parent=11 // pred_check_branch
          %527 = sbr.rel (%p525) target = $region40
        $region39: #{tpu_custom_call.1} parent=11 // pred_region
          %s529 = ssub.s32 16, 16
          %530 = vsyncadd [#allocation19], %s529
          %s532 = sshll.u32 [#allocation20], 4
          %s533 = int_to_ptr.vmem [resolvable:$true] %s532
          %535 = dma.hbm_to_vmem [thread:$0]  %s8, 16, %s533, [#allocation19]
        $region40: #{tpu_custom_call.1} parent=11 // pred_fallthru
          _
        // Predicated region
        $region41: #{tpu_custom_call.1} parent=11 // pred_check
          %p536 = pneg %p275
        $region42: #{tpu_custom_call.1} parent=11 // pred_check_branch
          %538 = sbr.rel (%p536) target = $region44
        $region43: #{tpu_custom_call.1} parent=11 // pred_region
          %s540 = ssub.s32 16, 16
          %541 = vsyncadd [#allocation22], %s540
          %s543 = sshll.u32 [#allocation21], 4
          %s544 = int_to_ptr.vmem [resolvable:$true] %s543
          %546 = dma.hbm_to_vmem [thread:$0]  %s9, 16, %s544, [#allocation22]
        $region44: #{tpu_custom_call.1} parent=11 // pred_fallthru
          _
        // Predicated region
        $region45: #{tpu_custom_call.1} parent=11 // pred_check
          %p547 = pneg %p296
        $region46: #{tpu_custom_call.1} parent=11 // pred_check_branch
          %549 = sbr.rel (%p547) target = $region48
        $region47: #{tpu_custom_call.1} parent=11 // pred_region
          %s551 = ssub.s32 16, 16
          %552 = vsyncadd [#allocation22], %s551
          %s554 = sshll.u32 [#allocation23], 4
          %s555 = int_to_ptr.vmem [resolvable:$true] %s554
          %557 = dma.hbm_to_vmem [thread:$0]  %s10, 16, %s555, [#allocation22]
        $region48: #{tpu_custom_call.1} parent=11 // pred_fallthru
          _
        // Predicated region
        $region49: #{tpu_custom_call.1} parent=11 // pred_check
          %p558 = pneg %p317
        $region50: #{tpu_custom_call.1} parent=11 // pred_check_branch
          %560 = sbr.rel (%p558) target = $region52
        $region51: #{tpu_custom_call.1} parent=11 // pred_region
          %s562 = ssub.s32 256, 256
          %563 = vsyncadd [#allocation25], %s562
          %s564 = sshll.u32 [#allocation24], 4
          %s565 = int_to_ptr.vmem [resolvable:$true] %s564
          %570 = dma.hbm_to_vmem [thread:$0]  %s11, 256, %s565, [#allocation25], 64, 64, 4
        $region52: #{tpu_custom_call.1} parent=11 // pred_fallthru
          _
        // Predicated region
        $region53: #{tpu_custom_call.1} parent=11 // pred_check
          %p571 = pneg %p338
        $region54: #{tpu_custom_call.1} parent=11 // pred_check_branch
          %573 = sbr.rel (%p571) target = $region56
        $region55: #{tpu_custom_call.1} parent=11 // pred_region
          %s575 = ssub.s32 16, 16
          %576 = vsyncadd [#allocation25], %s575
          %s578 = sshll.u32 [#allocation26], 4
          %s579 = int_to_ptr.vmem [resolvable:$true] %s578
          %581 = dma.hbm_to_vmem [thread:$0]  %s12, 16, %s579, [#allocation25]
        $region56: #{tpu_custom_call.1} parent=11 // pred_fallthru
          _
        // Predicated region
        $region57: #{tpu_custom_call.1} parent=11 // pred_check
          %p582 = pneg %p359
        $region58: #{tpu_custom_call.1} parent=11 // pred_check_branch
          %584 = sbr.rel (%p582) target = $region60
        $region59: #{tpu_custom_call.1} parent=11 // pred_region
          %s586 = ssub.s32 1024, 1024
          %587 = vsyncadd [#allocation28], %s586
          %s588 = sshll.u32 [#allocation27], 4
          %s589 = int_to_ptr.vmem [resolvable:$true] %s588
          %594 = dma.hbm_to_vmem [thread:$0]  %s13, 1024, %s589, [#allocation28], 64, 64, 4
        $region60: #{tpu_custom_call.1} parent=11 // pred_fallthru
          _
        // Predicated region
        $region61: #{tpu_custom_call.1} parent=11 // pred_check
          %p595 = pneg %p380
        $region62: #{tpu_custom_call.1} parent=11 // pred_check_branch
          %597 = sbr.rel (%p595) target = $region64
        $region63: #{tpu_custom_call.1} parent=11 // pred_region
          %s599 = ssub.s32 16, 16
          %600 = vsyncadd [#allocation28], %s599
          %s602 = sshll.u32 [#allocation29], 4
          %s603 = int_to_ptr.vmem [resolvable:$true] %s602
          %605 = dma.hbm_to_vmem [thread:$0]  %s14, 16, %s603, [#allocation28]
        $region64: #{tpu_custom_call.1} parent=11 // pred_fallthru
          _
      $region12: #{tpu_custom_call.1} parent=5 // pred_fallthru
        _
      %p606 = scmp.lt.s32.totalorder %s41, 2
      // Predicated region
      $region65: #{tpu_custom_call.1} parent=5 // pred_check
        %p607 = pneg %p606
      $region66: #{tpu_custom_call.1} parent=5 // pred_check_branch
        %609 = sbr.rel (%p607) target = $region68
      $region67: #{tpu_custom_call.1} parent=5 // pred_region
        // Predicated region
        $region69: #{tpu_custom_call.1} parent=67 // pred_check
          %p610 = pneg %p75
        $region70: #{tpu_custom_call.1} parent=67 // pred_check_branch
          %612 = sbr.rel (%p610) target = $region72
        $region71: #{tpu_custom_call.1} parent=67 // pred_region
          %s613 = sand.u32 %s65, 1
          %s614 = scalar_lea.sflag [#allocation7], %s613
          %s615 = sand.u32 %s65, 1
          %s616 = smul.addr %s615, 8
          %s617 = scalar_lea.vmem [#allocation6], %s616
          %s619 = ssub.s32 128, 128
          %620 = vsyncadd %s614, %s619
          %s621 = sadd.s32 %s49, %s48
          %s622 = smul.addr %s621, 128
          %s623 = scalar_lea.hbm %s0, %s622
          %s625 = sshll.u32 %s617, 4
          %s626 = int_to_ptr.vmem [resolvable:$true] %s625
          %628 = dma.hbm_to_vmem [thread:$0]  %s623, 128, %s626, %s614
        $region72: #{tpu_custom_call.1} parent=67 // pred_fallthru
          _
        // Predicated region
        $region73: #{tpu_custom_call.1} parent=67 // pred_check
          %p629 = pneg %p101
        $region74: #{tpu_custom_call.1} parent=67 // pred_check_branch
          %631 = sbr.rel (%p629) target = $region76
        $region75: #{tpu_custom_call.1} parent=67 // pred_region
          %s632 = sand.u32 %s41, 1
          %s633 = scalar_lea.sflag [#allocation10], %s632
          %s634 = sand.u32 %s91, 1
          %s635 = smul.addr %s634, 8
          %s636 = scalar_lea.vmem [#allocation9], %s635
          %s638 = ssub.s32 128, 128
          %639 = vsyncadd %s633, %s638
          %s640 = smul.addr %s48, 128
          %s641 = scalar_lea.hbm %s1, %s640
          %s643 = sshll.u32 %s636, 4
          %s644 = int_to_ptr.vmem [resolvable:$true] %s643
          %646 = dma.hbm_to_vmem [thread:$0]  %s641, 128, %s644, %s633
        $region76: #{tpu_custom_call.1} parent=67 // pred_fallthru
          _
      $region68: #{tpu_custom_call.1} parent=5 // pred_fallthru
        _
      %p647 = scmp.le.s32.totalorder 1, %s41
      %p648 = scmp.lt.s32.totalorder %s41, 3
      %p649 = pnand %p647, %p648
      %p650 = pneg %p649
      // Predicated region
      $region77: #{tpu_custom_call.1} parent=5 // pred_check
        _
      $region78: #{tpu_custom_call.1} parent=5 // pred_check_branch
        %652 = sbr.rel (%p649) target = $region80
      $region79: #{tpu_custom_call.1} parent=5 // pred_region
        %s653 = ssub.s32 %s41, 1
        %s654 = sand.u32 %s68, 1
        %s655 = scalar_lea.sflag [#allocation7], %s654
        %s656 = sand.u32 %s68, 1
        %s657 = smul.addr %s656, 8
        %s658 = scalar_lea.vmem [#allocation6], %s657
        // Predicated region
        $region81: #{tpu_custom_call.1} parent=79 // pred_check
          %p659 = pneg %p81
        $region82: #{tpu_custom_call.1} parent=79 // pred_check_branch
          %661 = sbr.rel (%p659) target = $region84
        $region83: #{tpu_custom_call.1} parent=79 // pred_region
          %662 = dma.done %s655, 128
        $region84: #{tpu_custom_call.1} parent=79 // pred_fallthru
          _
        %s663 = sand.u32 %s46, 1
        %s664 = scalar_lea.sflag [#allocation10], %s663
        %s665 = sand.u32 %s94, 1
        %s666 = smul.addr %s665, 8
        %s667 = scalar_lea.vmem [#allocation9], %s666
        // Predicated region
        $region85: #{tpu_custom_call.1} parent=79 // pred_check
          %p668 = pneg %p107
        $region86: #{tpu_custom_call.1} parent=79 // pred_check_branch
          %670 = sbr.rel (%p668) target = $region88
        $region87: #{tpu_custom_call.1} parent=79 // pred_region
          %671 = dma.done %s664, 128
        $region88: #{tpu_custom_call.1} parent=79 // pred_fallthru
          _
        // Predicated region
        $region89: #{tpu_custom_call.1} parent=79 // pred_check
          %p672 = pneg %p128
        $region90: #{tpu_custom_call.1} parent=79 // pred_check_branch
          %674 = sbr.rel (%p672) target = $region92
        $region91: #{tpu_custom_call.1} parent=79 // pred_region
          %675 = dma.done [#allocation10], 16
        $region92: #{tpu_custom_call.1} parent=79 // pred_fallthru
          _
        // Predicated region
        $region93: #{tpu_custom_call.1} parent=79 // pred_check
          %p676 = pneg %p149
        $region94: #{tpu_custom_call.1} parent=79 // pred_check_branch
          %678 = sbr.rel (%p676) target = $region96
        $region95: #{tpu_custom_call.1} parent=79 // pred_region
          %679 = dma.done [#allocation13], 16
        $region96: #{tpu_custom_call.1} parent=79 // pred_fallthru
          _
        // Predicated region
        $region97: #{tpu_custom_call.1} parent=79 // pred_check
          %p680 = pneg %p170
        $region98: #{tpu_custom_call.1} parent=79 // pred_check_branch
          %682 = sbr.rel (%p680) target = $region100
        $region99: #{tpu_custom_call.1} parent=79 // pred_region
          %683 = dma.done [#allocation13], 256
        $region100: #{tpu_custom_call.1} parent=79 // pred_fallthru
          _
        // Predicated region
        $region101: #{tpu_custom_call.1} parent=79 // pred_check
          %p684 = pneg %p191
        $region102: #{tpu_custom_call.1} parent=79 // pred_check_branch
          %686 = sbr.rel (%p684) target = $region104
        $region103: #{tpu_custom_call.1} parent=79 // pred_region
          %687 = dma.done [#allocation16], 256
        $region104: #{tpu_custom_call.1} parent=79 // pred_fallthru
          _
        // Predicated region
        $region105: #{tpu_custom_call.1} parent=79 // pred_check
          %p688 = pneg %p212
        $region106: #{tpu_custom_call.1} parent=79 // pred_check_branch
          %690 = sbr.rel (%p688) target = $region108
        $region107: #{tpu_custom_call.1} parent=79 // pred_region
          %691 = dma.done [#allocation16], 256
        $region108: #{tpu_custom_call.1} parent=79 // pred_fallthru
          _
        // Predicated region
        $region109: #{tpu_custom_call.1} parent=79 // pred_check
          %p692 = pneg %p233
        $region110: #{tpu_custom_call.1} parent=79 // pred_check_branch
          %694 = sbr.rel (%p692) target = $region112
        $region111: #{tpu_custom_call.1} parent=79 // pred_region
          %695 = dma.done [#allocation19], 256
        $region112: #{tpu_custom_call.1} parent=79 // pred_fallthru
          _
        // Predicated region
        $region113: #{tpu_custom_call.1} parent=79 // pred_check
          %p696 = pneg %p254
        $region114: #{tpu_custom_call.1} parent=79 // pred_check_branch
          %698 = sbr.rel (%p696) target = $region116
        $region115: #{tpu_custom_call.1} parent=79 // pred_region
          %699 = dma.done [#allocation19], 16
        $region116: #{tpu_custom_call.1} parent=79 // pred_fallthru
          _
        // Predicated region
        $region117: #{tpu_custom_call.1} parent=79 // pred_check
          %p700 = pneg %p275
        $region118: #{tpu_custom_call.1} parent=79 // pred_check_branch
          %702 = sbr.rel (%p700) target = $region120
        $region119: #{tpu_custom_call.1} parent=79 // pred_region
          %703 = dma.done [#allocation22], 16
        $region120: #{tpu_custom_call.1} parent=79 // pred_fallthru
          _
        // Predicated region
        $region121: #{tpu_custom_call.1} parent=79 // pred_check
          %p704 = pneg %p296
        $region122: #{tpu_custom_call.1} parent=79 // pred_check_branch
          %706 = sbr.rel (%p704) target = $region124
        $region123: #{tpu_custom_call.1} parent=79 // pred_region
          %707 = dma.done [#allocation22], 16
        $region124: #{tpu_custom_call.1} parent=79 // pred_fallthru
          _
        // Predicated region
        $region125: #{tpu_custom_call.1} parent=79 // pred_check
          %p708 = pneg %p317
        $region126: #{tpu_custom_call.1} parent=79 // pred_check_branch
          %710 = sbr.rel (%p708) target = $region128
        $region127: #{tpu_custom_call.1} parent=79 // pred_region
          %711 = dma.done [#allocation25], 256
        $region128: #{tpu_custom_call.1} parent=79 // pred_fallthru
          _
        // Predicated region
        $region129: #{tpu_custom_call.1} parent=79 // pred_check
          %p712 = pneg %p338
        $region130: #{tpu_custom_call.1} parent=79 // pred_check_branch
          %714 = sbr.rel (%p712) target = $region132
        $region131: #{tpu_custom_call.1} parent=79 // pred_region
          %715 = dma.done [#allocation25], 16
        $region132: #{tpu_custom_call.1} parent=79 // pred_fallthru
          _
        // Predicated region
        $region133: #{tpu_custom_call.1} parent=79 // pred_check
          %p716 = pneg %p359
        $region134: #{tpu_custom_call.1} parent=79 // pred_check_branch
          %718 = sbr.rel (%p716) target = $region136
        $region135: #{tpu_custom_call.1} parent=79 // pred_region
          %719 = dma.done [#allocation28], 1024
        $region136: #{tpu_custom_call.1} parent=79 // pred_fallthru
          _
        // Predicated region
        $region137: #{tpu_custom_call.1} parent=79 // pred_check
          %p720 = pneg %p380
        $region138: #{tpu_custom_call.1} parent=79 // pred_check_branch
          %722 = sbr.rel (%p720) target = $region140
        $region139: #{tpu_custom_call.1} parent=79 // pred_region
          %723 = dma.done [#allocation28], 16
        $region140: #{tpu_custom_call.1} parent=79 // pred_fallthru
          _
        %s724 = sand.u32 %s68, 1
        %s725 = scalar_lea.sflag [#allocation7], %s724
        %s726 = sand.u32 %s68, 1
        %s727 = smul.addr %s726, 8
        %s728 = scalar_lea.vmem [#allocation6], %s727
        %p729 = pneg %p81
        %p730 = pneg %p78
        %s731 = sand.u32 %s46, 1
        %s732 = scalar_lea.sflag [#allocation10], %s731
        %s733 = sand.u32 %s94, 1
        %s734 = smul.addr %s733, 8
        %s735 = scalar_lea.vmem [#allocation9], %s734
        %p736 = pneg %p107
        %p737 = pneg %p104
        %p738 = pneg %p128
        %p739 = pneg %p125
        %p740 = pneg %p149
        %p741 = pneg %p146
        %p742 = pneg %p170
        %p743 = pneg %p167
        %p744 = pneg %p191
        %p745 = pneg %p188
        %p746 = pneg %p212
        %p747 = pneg %p209
        %p748 = pneg %p233
        %p749 = pneg %p230
        %p750 = pneg %p254
        %p751 = pneg %p251
        %p752 = pneg %p275
        %p753 = pneg %p272
        %p754 = pneg %p296
        %p755 = pneg %p293
        %p756 = pneg %p317
        %p757 = pneg %p314
        %p758 = pneg %p338
        %p759 = pneg %p335
        %p760 = pneg %p359
        %p761 = pneg %p356
        %p762 = pneg %p380
        %p763 = pneg %p377
        %p764 = pneg %p408
        %p765 = pneg %p405
        %s766 = sand.u32 %s395, 1
        %s767 = scalar_lea.sflag [#allocation8], %s766
        %s768 = sand.u32 %s395, 1
        %s769 = smul.addr %s768, 8
        %s770 = scalar_lea.vmem [#allocation30], %s769
        %p771 = pneg %p436
        %p772 = pneg %p433
        %s773 = sand.u32 %s423, 1
        %s774 = scalar_lea.sflag [#allocation32], %s773
        %s775 = sand.u32 %s423, 1
        %s776 = smul.addr %s775, 32
        %s777 = scalar_lea.vmem [#allocation31], %s776
        %v779 = vld [vmem:[%s658] sm:$0xff]
        %v780 = vld [vmem:[#allocation11] sm:$0x1]
        %v781 = vld [vmem:[#allocation12] sm:$0x1]
        %p782 = scmp.eq.s32.totalorder %s51, 0
        // Predicated region
        $region141: #{tpu_custom_call.1} parent=79 // pred_check
          %p783 = pneg %p782
        $region142: #{tpu_custom_call.1} parent=79 // pred_check_branch
          %785 = sbr.rel (%p783) target = $region144
        $region143: #{tpu_custom_call.1} parent=79 // pred_region
          %v786 = vld [vmem:[%s667] sm:$0xff]
          %vm787 = vcmask 261120
          %v788 = vsel %vm787, %v786, 0.0
          %789 = vadd.xlane.f32.xlu0 %v788
          %v790 = vpop.xlane.xlu0 %789
          %v791 = vmul.f32 %v786, %v786
          %v792 = vsel %vm787, %v791, 0.0
          %793 = vadd.xlane.f32.xlu0 %v792
          %v794 = vpop.xlane.xlu0 %793
          %v795 = vmul.f32 %v790, 0.03125
          %v796 = vmul.f32 %v794, 0.03125
          %v797 = vmul.f32 %v795, %v795
          %v798 = vsub.f32 %v796, %v797
          %v799 = vsub.f32 %v786, %v795
          %v800 = vadd.f32 %v798, 1e-05
          %v801 = vrsqrt.pop %v800
          %v802 = vmul.f32 %v799, %v801
          %v804 = vlaneseq
          %v805 = vshrl.u32 %v804, 7
          %v806 = vsub.s32 0, %v805
          %v807 = vrot.slane %v780, %v806
          %v809 = vmul.f32 %v802, %v807
          %v811 = vlaneseq
          %v812 = vshrl.u32 %v811, 7
          %v813 = vsub.s32 0, %v812
          %v814 = vrot.slane %v781, %v813
          %v816 = vadd.f32 %v809, %v814
          %v817 = vpack.c.bf16 %v816, %v816
          %v818 = vld [vmem:[#allocation15] sm:$0xf]
          %v819 = vld [vmem:[#allocation15 + $0x4] sm:$0xf]
          %v820 = vld [vmem:[#allocation15 + $0x8] sm:$0xf]
          %v821 = vld [vmem:[#allocation15 + $0xc] sm:$0xf]
          %v826 = vunpack.c.l.b16 %v818
          %v827 = vunpack.c.l.b16 %v819
          %v828 = vunpack.c.l.b16 %v820
          %v829 = vunpack.c.l.b16 %v821
          %v830 = vpack.c.b16 %v827, %v826
          %v831 = vpack.c.b16 %v829, %v828
          %v835 = vsel %vm787, %v817, 0
          %837 = vmatprep.subr.bf16.mxu0 0
          %838 = vmatpush1.bf16.msra.mxu0 %v830
          %839 = vmatprep.subr.bf16.mxu0 0
          %840 = vmatpush1.bf16.msra.mxu0 %v831
          %841 = vmatprep.subr.bf16.mxu0 0
          %842 = vmatpush1.bf16.msra.mxu0 0
          %843 = vmatprep.subr.bf16.mxu0 0
          %844 = vmatpush1.bf16.msra.mxu0 0
          %845 = vmatprep.subr.bf16.mxu0 0
          %846 = vmatpush1.bf16.msra.mxu0 0
          %847 = vmatprep.subr.bf16.mxu0 0
          %848 = vmatpush1.bf16.msra.mxu0 0
          %849 = vmatprep.subr.bf16.mxu0 0
          %850 = vmatpush1.bf16.msra.mxu0 0
          %851 = vmatprep.subr.bf16.mxu0 0
          %852 = vmatpush1.bf16.msra.mxu0 0
          %853 = vmatprep.subr.bf16.mxu0 0
          %854 = vmatpush1.bf16.msra.mxu0 0
          %855 = vmatprep.subr.bf16.mxu0 0
          %856 = vmatpush1.bf16.msra.mxu0 0
          %857 = vmatprep.subr.bf16.mxu0 0
          %858 = vmatpush1.bf16.msra.mxu0 0
          %859 = vmatprep.subr.bf16.mxu0 0
          %860 = vmatpush1.bf16.msra.mxu0 0
          %861 = vmatprep.subr.bf16.mxu0 0
          %862 = vmatpush1.bf16.msra.mxu0 0
          %863 = vmatprep.subr.bf16.mxu0 0
          %864 = vmatpush1.bf16.msra.mxu0 0
          %865 = vmatprep.subr.bf16.mxu0 0
          %866 = vmatpush1.bf16.msra.mxu0 0
          %867 = vmatprep.subr.bf16.mxu0 0
          %868 = vmatpush1.bf16.msra.mxu0 0
          %869 = vmatprep.mubr.bf16.mxu0 0
          %870 = vmatmul.mubr.bf16.gmra.mrb[0].mxu0 %v835
          %v871 = vpop.f32.mrb[0].mxu0
          %v872 = vadd.f32 0.0, %v871
          %v873 = vpop.f32.mrb[0].mxu0
          %v874 = vpop.f32.mrb[0].mxu0
          %v875 = vpop.f32.mrb[0].mxu0
          %876 = vdwg.mxu0
          %v877 = vpack.c.bf16 %v872, %v872
          %v878 = vld [vmem:[#allocation17] sm:$0xf]
          %v879 = vld [vmem:[#allocation17 + $0x4] sm:$0xf]
          %v880 = vld [vmem:[#allocation17 + $0x8] sm:$0xf]
          %v881 = vld [vmem:[#allocation17 + $0xc] sm:$0xf]
          %v886 = vunpack.c.l.b16 %v878
          %v887 = vunpack.c.l.b16 %v879
          %v888 = vunpack.c.l.b16 %v880
          %v889 = vunpack.c.l.b16 %v881
          %v890 = vpack.c.b16 %v887, %v886
          %v891 = vpack.c.b16 %v889, %v888
          %894 = vmatprep.subr.bf16.mxu0 0
          %895 = vmatpush1.bf16.msra.mxu0 %v890
          %896 = vmatprep.subr.bf16.mxu0 0
          %897 = vmatpush1.bf16.msra.mxu0 %v891
          %898 = vmatprep.subr.bf16.mxu0 0
          %899 = vmatpush1.bf16.msra.mxu0 0
          %900 = vmatprep.subr.bf16.mxu0 0
          %901 = vmatpush1.bf16.msra.mxu0 0
          %902 = vmatprep.subr.bf16.mxu0 0
          %903 = vmatpush1.bf16.msra.mxu0 0
          %904 = vmatprep.subr.bf16.mxu0 0
          %905 = vmatpush1.bf16.msra.mxu0 0
          %906 = vmatprep.subr.bf16.mxu0 0
          %907 = vmatpush1.bf16.msra.mxu0 0
          %908 = vmatprep.subr.bf16.mxu0 0
          %909 = vmatpush1.bf16.msra.mxu0 0
          %910 = vmatprep.subr.bf16.mxu0 0
          %911 = vmatpush1.bf16.msra.mxu0 0
          %912 = vmatprep.subr.bf16.mxu0 0
          %913 = vmatpush1.bf16.msra.mxu0 0
          %914 = vmatprep.subr.bf16.mxu0 0
          %915 = vmatpush1.bf16.msra.mxu0 0
          %916 = vmatprep.subr.bf16.mxu0 0
          %917 = vmatpush1.bf16.msra.mxu0 0
          %918 = vmatprep.subr.bf16.mxu0 0
          %919 = vmatpush1.bf16.msra.mxu0 0
          %920 = vmatprep.subr.bf16.mxu0 0
          %921 = vmatpush1.bf16.msra.mxu0 0
          %922 = vmatprep.subr.bf16.mxu0 0
          %923 = vmatpush1.bf16.msra.mxu0 0
          %924 = vmatprep.subr.bf16.mxu0 0
          %925 = vmatpush1.bf16.msra.mxu0 0
          %926 = vmatprep.mubr.bf16.mxu0 0
          %927 = vmatmul.mubr.bf16.gmra.mrb[0].mxu0 %v835
          %v928 = vpop.f32.mrb[0].mxu0
          %v929 = vadd.f32 0.0, %v928
          %v930 = vpop.f32.mrb[0].mxu0
          %v931 = vpop.f32.mrb[0].mxu0
          %v932 = vpop.f32.mrb[0].mxu0
          %933 = vdwg.mxu0
          %v934 = vpack.c.bf16 %v929, %v929
          %vm935 = vcmask 60416
          %936 = vst.msk [vmem:[#allocation2] sm:$0xf] %vm935, %v877
          %937 = vst.msk [vmem:[#allocation3] sm:$0xf] %vm935, %v934
          %v939 = vunpack.c.l.b16 %v877
          %v940 = vpack.c.b16 %v939, %v939
          %941 = vrot.lane.b32.xlu0 %v940, 120
          %v942 = vpop.permute.xlu0 %941
          %s944 = scalar_lea.vmem [#allocation2], 4
          %945 = vst.msk [vmem:[%s944] sm:$0xf] %vm935, %v942
          %v947 = vunpack.c.l.b16 %v934
          %v948 = vpack.c.b16 %v947, %v947
          %949 = vrot.lane.b32.xlu0 %v948, 120
          %v950 = vpop.permute.xlu0 %949
          %s952 = scalar_lea.vmem [#allocation3], 4
          %953 = vst.msk [vmem:[%s952] sm:$0xf] %vm935, %v950
          %954 = vrot.lane.b32.xlu0 %v940, 112
          %v955 = vpop.permute.xlu0 %954
          %s957 = scalar_lea.vmem [#allocation2], 8
          %958 = vst.msk [vmem:[%s957] sm:$0xf] %vm935, %v955
          %959 = vrot.lane.b32.xlu0 %v948, 112
          %v960 = vpop.permute.xlu0 %959
          %s962 = scalar_lea.vmem [#allocation3], 8
          %963 = vst.msk [vmem:[%s962] sm:$0xf] %vm935, %v960
          %964 = vrot.lane.b32.xlu0 %v940, 104
          %v965 = vpop.permute.xlu0 %964
          %s967 = scalar_lea.vmem [#allocation2], 12
          %968 = vst.msk [vmem:[%s967] sm:$0xf] %vm935, %v965
          %969 = vrot.lane.b32.xlu0 %v948, 104
          %v970 = vpop.permute.xlu0 %969
          %s972 = scalar_lea.vmem [#allocation3], 12
          %973 = vst.msk [vmem:[%s972] sm:$0xf] %vm935, %v970
        $region144: #{tpu_custom_call.1} parent=79 // pred_fallthru
          _
        %vm974 = vcmask 261120
        %v975 = vsel %vm974, %v779, 0.0
        %976 = vadd.xlane.f32.xlu0 %v975
        %v977 = vpop.xlane.xlu0 %976
        %v978 = vmul.f32 %v779, %v779
        %v979 = vsel %vm974, %v978, 0.0
        %980 = vadd.xlane.f32.xlu0 %v979
        %v981 = vpop.xlane.xlu0 %980
        %v982 = vmul.f32 %v977, 0.03125
        %v983 = vmul.f32 %v981, 0.03125
        %v984 = vmul.f32 %v982, %v982
        %v985 = vsub.f32 %v983, %v984
        %v986 = vsub.f32 %v779, %v982
        %v987 = vadd.f32 %v985, 1e-05
        %v988 = vrsqrt.pop %v987
        %v989 = vmul.f32 %v986, %v988
        %v991 = vlaneseq
        %v992 = vshrl.u32 %v991, 7
        %v993 = vsub.s32 0, %v992
        %v994 = vrot.slane %v780, %v993
        %v996 = vmul.f32 %v989, %v994
        %v998 = vlaneseq
        %v999 = vshrl.u32 %v998, 7
        %v1000 = vsub.s32 0, %v999
        %v1001 = vrot.slane %v781, %v1000
        %v1003 = vadd.f32 %v996, %v1001
        %v1004 = vpack.c.bf16 %v1003, %v1003
        %v1005 = vld [vmem:[#allocation14] sm:$0xf]
        %v1006 = vld [vmem:[#allocation14 + $0x4] sm:$0xf]
        %v1007 = vld [vmem:[#allocation14 + $0x8] sm:$0xf]
        %v1008 = vld [vmem:[#allocation14 + $0xc] sm:$0xf]
        %v1013 = vunpack.c.l.b16 %v1005
        %v1014 = vunpack.c.l.b16 %v1006
        %v1015 = vunpack.c.l.b16 %v1007
        %v1016 = vunpack.c.l.b16 %v1008
        %v1017 = vpack.c.b16 %v1014, %v1013
        %v1018 = vpack.c.b16 %v1016, %v1015
        %v1022 = vsel %vm974, %v1004, 0
        %1024 = vmatprep.subr.bf16.mxu0 0
        %1025 = vmatpush1.bf16.msra.mxu0 %v1017
        %1026 = vmatprep.subr.bf16.mxu0 0
        %1027 = vmatpush1.bf16.msra.mxu0 %v1018
        %1028 = vmatprep.subr.bf16.mxu0 0
        %1029 = vmatpush1.bf16.msra.mxu0 0
        %1030 = vmatprep.subr.bf16.mxu0 0
        %1031 = vmatpush1.bf16.msra.mxu0 0
        %1032 = vmatprep.subr.bf16.mxu0 0
        %1033 = vmatpush1.bf16.msra.mxu0 0
        %1034 = vmatprep.subr.bf16.mxu0 0
        %1035 = vmatpush1.bf16.msra.mxu0 0
        %1036 = vmatprep.subr.bf16.mxu0 0
        %1037 = vmatpush1.bf16.msra.mxu0 0
        %1038 = vmatprep.subr.bf16.mxu0 0
        %1039 = vmatpush1.bf16.msra.mxu0 0
        %1040 = vmatprep.subr.bf16.mxu0 0
        %1041 = vmatpush1.bf16.msra.mxu0 0
        %1042 = vmatprep.subr.bf16.mxu0 0
        %1043 = vmatpush1.bf16.msra.mxu0 0
        %1044 = vmatprep.subr.bf16.mxu0 0
        %1045 = vmatpush1.bf16.msra.mxu0 0
        %1046 = vmatprep.subr.bf16.mxu0 0
        %1047 = vmatpush1.bf16.msra.mxu0 0
        %1048 = vmatprep.subr.bf16.mxu0 0
        %1049 = vmatpush1.bf16.msra.mxu0 0
        %1050 = vmatprep.subr.bf16.mxu0 0
        %1051 = vmatpush1.bf16.msra.mxu0 0
        %1052 = vmatprep.subr.bf16.mxu0 0
        %1053 = vmatpush1.bf16.msra.mxu0 0
        %1054 = vmatprep.subr.bf16.mxu0 0
        %1055 = vmatpush1.bf16.msra.mxu0 0
        %1056 = vmatprep.mubr.bf16.mxu0 0
        %1057 = vmatmul.mubr.bf16.gmra.mrb[0].mxu0 %v1022
        %v1058 = vpop.f32.mrb[0].mxu0
        %v1059 = vadd.f32 0.0, %v1058
        %v1060 = vpop.f32.mrb[0].mxu0
        %v1061 = vpop.f32.mrb[0].mxu0
        %v1062 = vpop.f32.mrb[0].mxu0
        %1063 = vdwg.mxu0
        %v1064 = vpack.c.bf16 %v1059, %v1059
        %vm1065 = vcmask 60416
        %1066 = vst.msk [vmem:[#allocation4] sm:$0xf] %vm1065, %v1064
        %v1068 = vunpack.c.l.b16 %v1064
        %v1069 = vpack.c.b16 %v1068, %v1068
        %1070 = vrot.lane.b32.xlu0 %v1069, 120
        %v1071 = vpop.permute.xlu0 %1070
        %s1073 = scalar_lea.vmem [#allocation4], 4
        %1074 = vst.msk [vmem:[%s1073] sm:$0xf] %vm1065, %v1071
        %1075 = vrot.lane.b32.xlu0 %v1069, 112
        %v1076 = vpop.permute.xlu0 %1075
        %s1078 = scalar_lea.vmem [#allocation4], 8
        %1079 = vst.msk [vmem:[%s1078] sm:$0xf] %vm1065, %v1076
        %1080 = vrot.lane.b32.xlu0 %v1069, 104
        %v1081 = vpop.permute.xlu0 %1080
        %s1083 = scalar_lea.vmem [#allocation4], 12
        %1084 = vst.msk [vmem:[%s1083] sm:$0xf] %vm1065, %v1081
        %v1085 = vld [vmem:[#allocation4] sm:$0xf]
        %v1086 = vld [vmem:[#allocation4 + $0x4] sm:$0xf]
        %v1087 = vld [vmem:[#allocation4 + $0x8] sm:$0xf]
        %v1088 = vld [vmem:[#allocation4 + $0xc] sm:$0xf]
        %v1089 = vld [vmem:[#allocation2] sm:$0xf]
        %v1090 = vld [vmem:[#allocation2 + $0x4] sm:$0xf]
        %v1091 = vld [vmem:[#allocation2 + $0x8] sm:$0xf]
        %v1092 = vld [vmem:[#allocation2 + $0xc] sm:$0xf]
        %vm1093 = vcmask 64512
        %v1095 = vsel %vm1093, %v1085, 0
        %v1098 = vsel %vm1093, %v1089, 0
        %1100 = vmatprep.subr.bf16.mxu0 0
        %1101 = vmatpush1.bf16.xpose.msra.mxu0 %v1098
        %1102 = vmatprep.subr.bf16.mxu0 0
        %1103 = vmatpush1.bf16.xpose.msra.mxu0 0
        %1104 = vmatprep.subr.bf16.mxu0 0
        %1105 = vmatpush1.bf16.xpose.msra.mxu0 0
        %1106 = vmatprep.subr.bf16.mxu0 0
        %1107 = vmatpush1.bf16.xpose.msra.mxu0 0
        %1108 = vmatprep.subr.bf16.mxu0 0
        %1109 = vmatpush1.bf16.xpose.msra.mxu0 0
        %1110 = vmatprep.subr.bf16.mxu0 0
        %1111 = vmatpush1.bf16.xpose.msra.mxu0 0
        %1112 = vmatprep.subr.bf16.mxu0 0
        %1113 = vmatpush1.bf16.xpose.msra.mxu0 0
        %1114 = vmatprep.subr.bf16.mxu0 0
        %1115 = vmatpush1.bf16.xpose.msra.mxu0 0
        %1116 = vmatprep.subr.bf16.mxu0 0
        %1117 = vmatpush1.bf16.xpose.msra.mxu0 0
        %1118 = vmatprep.subr.bf16.mxu0 0
        %1119 = vmatpush1.bf16.xpose.msra.mxu0 0
        %1120 = vmatprep.subr.bf16.mxu0 0
        %1121 = vmatpush1.bf16.xpose.msra.mxu0 0
        %1122 = vmatprep.subr.bf16.mxu0 0
        %1123 = vmatpush1.bf16.xpose.msra.mxu0 0
        %1124 = vmatprep.subr.bf16.mxu0 0
        %1125 = vmatpush1.bf16.xpose.msra.mxu0 0
        %1126 = vmatprep.subr.bf16.mxu0 0
        %1127 = vmatpush1.bf16.xpose.msra.mxu0 0
        %1128 = vmatprep.subr.bf16.mxu0 0
        %1129 = vmatpush1.bf16.xpose.msra.mxu0 0
        %1130 = vmatprep.subr.bf16.mxu0 0
        %1131 = vmatpush1.bf16.xpose.msra.mxu0 0
        %1132 = vmatprep.mubr.bf16.mxu0 0
        %1133 = vmatmul.mubr.bf16.gmra.mrb[0].mxu0 %v1095
        %v1134 = vpop.f32.mrb[0].mxu0
        %v1135 = vadd.f32 0.0, %v1134
        %v1136 = vpop.f32.mrb[0].mxu0
        %v1137 = vpop.f32.mrb[0].mxu0
        %v1138 = vpop.f32.mrb[0].mxu0
        %1139 = vdwg.mxu0
        %v1141 = vsel %vm1093, %v1086, 0
        %v1144 = vsel %vm1093, %v1090, 0
        %1146 = vmatprep.subr.bf16.mxu0 0
        %1147 = vmatpush1.bf16.xpose.msra.mxu0 %v1144
        %1148 = vmatprep.subr.bf16.mxu0 0
        %1149 = vmatpush1.bf16.xpose.msra.mxu0 0
        %1150 = vmatprep.subr.bf16.mxu0 0
        %1151 = vmatpush1.bf16.xpose.msra.mxu0 0
        %1152 = vmatprep.subr.bf16.mxu0 0
        %1153 = vmatpush1.bf16.xpose.msra.mxu0 0
        %1154 = vmatprep.subr.bf16.mxu0 0
        %1155 = vmatpush1.bf16.xpose.msra.mxu0 0
        %1156 = vmatprep.subr.bf16.mxu0 0
        %1157 = vmatpush1.bf16.xpose.msra.mxu0 0
        %1158 = vmatprep.subr.bf16.mxu0 0
        %1159 = vmatpush1.bf16.xpose.msra.mxu0 0
        %1160 = vmatprep.subr.bf16.mxu0 0
        %1161 = vmatpush1.bf16.xpose.msra.mxu0 0
        %1162 = vmatprep.subr.bf16.mxu0 0
        %1163 = vmatpush1.bf16.xpose.msra.mxu0 0
        %1164 = vmatprep.subr.bf16.mxu0 0
        %1165 = vmatpush1.bf16.xpose.msra.mxu0 0
        %1166 = vmatprep.subr.bf16.mxu0 0
        %1167 = vmatpush1.bf16.xpose.msra.mxu0 0
        %1168 = vmatprep.subr.bf16.mxu0 0
        %1169 = vmatpush1.bf16.xpose.msra.mxu0 0
        %1170 = vmatprep.subr.bf16.mxu0 0
        %1171 = vmatpush1.bf16.xpose.msra.mxu0 0
        %1172 = vmatprep.subr.bf16.mxu0 0
        %1173 = vmatpush1.bf16.xpose.msra.mxu0 0
        %1174 = vmatprep.subr.bf16.mxu0 0
        %1175 = vmatpush1.bf16.xpose.msra.mxu0 0
        %1176 = vmatprep.subr.bf16.mxu0 0
        %1177 = vmatpush1.bf16.xpose.msra.mxu0 0
        %1178 = vmatprep.mubr.bf16.mxu0 0
        %1179 = vmatmul.mubr.bf16.gmra.mrb[0].mxu0 %v1141
        %v1180 = vpop.f32.mrb[0].mxu0
        %v1181 = vadd.f32 0.0, %v1180
        %v1182 = vpop.f32.mrb[0].mxu0
        %v1183 = vpop.f32.mrb[0].mxu0
        %v1184 = vpop.f32.mrb[0].mxu0
        %1185 = vdwg.mxu0
        %v1187 = vsel %vm1093, %v1087, 0
        %v1190 = vsel %vm1093, %v1091, 0
        %1192 = vmatprep.subr.bf16.mxu0 0
        %1193 = vmatpush1.bf16.xpose.msra.mxu0 %v1190
        %1194 = vmatprep.subr.bf16.mxu0 0
        %1195 = vmatpush1.bf16.xpose.msra.mxu0 0
        %1196 = vmatprep.subr.bf16.mxu0 0
        %1197 = vmatpush1.bf16.xpose.msra.mxu0 0
        %1198 = vmatprep.subr.bf16.mxu0 0
        %1199 = vmatpush1.bf16.xpose.msra.mxu0 0
        %1200 = vmatprep.subr.bf16.mxu0 0
        %1201 = vmatpush1.bf16.xpose.msra.mxu0 0
        %1202 = vmatprep.subr.bf16.mxu0 0
        %1203 = vmatpush1.bf16.xpose.msra.mxu0 0
        %1204 = vmatprep.subr.bf16.mxu0 0
        %1205 = vmatpush1.bf16.xpose.msra.mxu0 0
        %1206 = vmatprep.subr.bf16.mxu0 0
        %1207 = vmatpush1.bf16.xpose.msra.mxu0 0
        %1208 = vmatprep.subr.bf16.mxu0 0
        %1209 = vmatpush1.bf16.xpose.msra.mxu0 0
        %1210 = vmatprep.subr.bf16.mxu0 0
        %1211 = vmatpush1.bf16.xpose.msra.mxu0 0
        %1212 = vmatprep.subr.bf16.mxu0 0
        %1213 = vmatpush1.bf16.xpose.msra.mxu0 0
        %1214 = vmatprep.subr.bf16.mxu0 0
        %1215 = vmatpush1.bf16.xpose.msra.mxu0 0
        %1216 = vmatprep.subr.bf16.mxu0 0
        %1217 = vmatpush1.bf16.xpose.msra.mxu0 0
        %1218 = vmatprep.subr.bf16.mxu0 0
        %1219 = vmatpush1.bf16.xpose.msra.mxu0 0
        %1220 = vmatprep.subr.bf16.mxu0 0
        %1221 = vmatpush1.bf16.xpose.msra.mxu0 0
        %1222 = vmatprep.subr.bf16.mxu0 0
        %1223 = vmatpush1.bf16.xpose.msra.mxu0 0
        %1224 = vmatprep.mubr.bf16.mxu0 0
        %1225 = vmatmul.mubr.bf16.gmra.mrb[0].mxu0 %v1187
        %v1226 = vpop.f32.mrb[0].mxu0
        %v1227 = vadd.f32 0.0, %v1226
        %v1228 = vpop.f32.mrb[0].mxu0
        %v1229 = vpop.f32.mrb[0].mxu0
        %v1230 = vpop.f32.mrb[0].mxu0
        %1231 = vdwg.mxu0
        %v1233 = vsel %vm1093, %v1088, 0
        %v1236 = vsel %vm1093, %v1092, 0
        %1238 = vmatprep.subr.bf16.mxu0 0
        %1239 = vmatpush1.bf16.xpose.msra.mxu0 %v1236
        %1240 = vmatprep.subr.bf16.mxu0 0
        %1241 = vmatpush1.bf16.xpose.msra.mxu0 0
        %1242 = vmatprep.subr.bf16.mxu0 0
        %1243 = vmatpush1.bf16.xpose.msra.mxu0 0
        %1244 = vmatprep.subr.bf16.mxu0 0
        %1245 = vmatpush1.bf16.xpose.msra.mxu0 0
        %1246 = vmatprep.subr.bf16.mxu0 0
        %1247 = vmatpush1.bf16.xpose.msra.mxu0 0
        %1248 = vmatprep.subr.bf16.mxu0 0
        %1249 = vmatpush1.bf16.xpose.msra.mxu0 0
        %1250 = vmatprep.subr.bf16.mxu0 0
        %1251 = vmatpush1.bf16.xpose.msra.mxu0 0
        %1252 = vmatprep.subr.bf16.mxu0 0
        %1253 = vmatpush1.bf16.xpose.msra.mxu0 0
        %1254 = vmatprep.subr.bf16.mxu0 0
        %1255 = vmatpush1.bf16.xpose.msra.mxu0 0
        %1256 = vmatprep.subr.bf16.mxu0 0
        %1257 = vmatpush1.bf16.xpose.msra.mxu0 0
        %1258 = vmatprep.subr.bf16.mxu0 0
        %1259 = vmatpush1.bf16.xpose.msra.mxu0 0
        %1260 = vmatprep.subr.bf16.mxu0 0
        %1261 = vmatpush1.bf16.xpose.msra.mxu0 0
        %1262 = vmatprep.subr.bf16.mxu0 0
        %1263 = vmatpush1.bf16.xpose.msra.mxu0 0
        %1264 = vmatprep.subr.bf16.mxu0 0
        %1265 = vmatpush1.bf16.xpose.msra.mxu0 0
        %1266 = vmatprep.subr.bf16.mxu0 0
        %1267 = vmatpush1.bf16.xpose.msra.mxu0 0
        %1268 = vmatprep.subr.bf16.mxu0 0
        %1269 = vmatpush1.bf16.xpose.msra.mxu0 0
        %1270 = vmatprep.mubr.bf16.mxu0 0
        %1271 = vmatmul.mubr.bf16.gmra.mrb[0].mxu0 %v1233
        %v1272 = vpop.f32.mrb[0].mxu0
        %v1273 = vadd.f32 0.0, %v1272
        %v1274 = vpop.f32.mrb[0].mxu0
        %v1275 = vpop.f32.mrb[0].mxu0
        %v1276 = vpop.f32.mrb[0].mxu0
        %1277 = vdwg.mxu0
        %v1278 = vsel %vm1093, %v1135, -inf
        %1279 = vmax.xlane.f32.xlu0 %v1278
        %v1280 = vpop.xlane.xlu0 %1279
        %v1281 = vsel %vm1093, %v1181, -inf
        %1282 = vmax.xlane.f32.xlu0 %v1281
        %v1283 = vpop.xlane.xlu0 %1282
        %v1284 = vsel %vm1093, %v1227, -inf
        %1285 = vmax.xlane.f32.xlu0 %v1284
        %v1286 = vpop.xlane.xlu0 %1285
        %v1287 = vsel %vm1093, %v1273, -inf
        %1288 = vmax.xlane.f32.xlu0 %v1287
        %v1289 = vpop.xlane.xlu0 %1288
        %v1290 = vsub.f32 %v1135, %v1280
        %v1291 = vsub.f32 %v1181, %v1283
        %v1292 = vsub.f32 %v1227, %v1286
        %v1293 = vsub.f32 %v1273, %v1289
        %v1294 = vmul.f32 %v1290, 1.442695
        %v1295 = vpow.pop %v1294
        %v1296 = vmul.f32 %v1291, 1.442695
        %v1297 = vpow.pop %v1296
        %v1298 = vmul.f32 %v1292, 1.442695
        %v1299 = vpow.pop %v1298
        %v1300 = vmul.f32 %v1293, 1.442695
        %v1301 = vpow.pop %v1300
        %v1302 = vsel %vm1093, %v1295, 0.0
        %1303 = vadd.xlane.f32.xlu0 %v1302
        %v1304 = vpop.xlane.xlu0 %1303
        %v1305 = vsel %vm1093, %v1297, 0.0
        %1306 = vadd.xlane.f32.xlu0 %v1305
        %v1307 = vpop.xlane.xlu0 %1306
        %v1308 = vsel %vm1093, %v1299, 0.0
        %1309 = vadd.xlane.f32.xlu0 %v1308
        %v1310 = vpop.xlane.xlu0 %1309
        %v1311 = vsel %vm1093, %v1301, 0.0
        %1312 = vadd.xlane.f32.xlu0 %v1311
        %v1313 = vpop.xlane.xlu0 %1312
        %v1314 = vrcp.pop %v1304
        %v1315 = vrcp.pop %v1307
        %v1316 = vrcp.pop %v1310
        %v1317 = vrcp.pop %v1313
        %v1318 = vmul.f32 %v1295, %v1314
        %v1319 = vmul.f32 %v1297, %v1315
        %v1320 = vmul.f32 %v1299, %v1316
        %v1321 = vmul.f32 %v1301, %v1317
        %1322 = vst.msk [vmem:[%s777] sm:$0xff] %vm1093, %v1318
        %1323 = vst.msk [vmem:[%s777 + $0x8] sm:$0xff] %vm1093, %v1319
        %1324 = vst.msk [vmem:[%s777 + $0x10] sm:$0xff] %vm1093, %v1320
        %1325 = vst.msk [vmem:[%s777 + $0x18] sm:$0xff] %vm1093, %v1321
        %v1326 = vpack.c.bf16 %v1318, %v1318
        %v1327 = vpack.c.bf16 %v1319, %v1319
        %v1328 = vpack.c.bf16 %v1320, %v1320
        %v1329 = vpack.c.bf16 %v1321, %v1321
        %v1330 = vld [vmem:[#allocation3] sm:$0xf]
        %v1331 = vld [vmem:[#allocation3 + $0x4] sm:$0xf]
        %v1332 = vld [vmem:[#allocation3 + $0x8] sm:$0xf]
        %v1333 = vld [vmem:[#allocation3 + $0xc] sm:$0xf]
        %v1335 = vsel %vm1093, %v1326, 0
        %vm1337 = vcmask 1043456
        %v1339 = vsel %vm1337, %v1330, 0
        %1341 = vmatprep.subr.bf16.mxu0 0
        %1342 = vmatpush1.bf16.msra.mxu0 %v1339
        %1343 = vmatprep.subr.bf16.mxu0 0
        %1344 = vmatpush1.bf16.msra.mxu0 0
        %1345 = vmatprep.subr.bf16.mxu0 0
        %1346 = vmatpush1.bf16.msra.mxu0 0
        %1347 = vmatprep.subr.bf16.mxu0 0
        %1348 = vmatpush1.bf16.msra.mxu0 0
        %1349 = vmatprep.subr.bf16.mxu0 0
        %1350 = vmatpush1.bf16.msra.mxu0 0
        %1351 = vmatprep.subr.bf16.mxu0 0
        %1352 = vmatpush1.bf16.msra.mxu0 0
        %1353 = vmatprep.subr.bf16.mxu0 0
        %1354 = vmatpush1.bf16.msra.mxu0 0
        %1355 = vmatprep.subr.bf16.mxu0 0
        %1356 = vmatpush1.bf16.msra.mxu0 0
        %1357 = vmatprep.subr.bf16.mxu0 0
        %1358 = vmatpush1.bf16.msra.mxu0 0
        %1359 = vmatprep.subr.bf16.mxu0 0
        %1360 = vmatpush1.bf16.msra.mxu0 0
        %1361 = vmatprep.subr.bf16.mxu0 0
        %1362 = vmatpush1.bf16.msra.mxu0 0
        %1363 = vmatprep.subr.bf16.mxu0 0
        %1364 = vmatpush1.bf16.msra.mxu0 0
        %1365 = vmatprep.subr.bf16.mxu0 0
        %1366 = vmatpush1.bf16.msra.mxu0 0
        %1367 = vmatprep.subr.bf16.mxu0 0
        %1368 = vmatpush1.bf16.msra.mxu0 0
        %1369 = vmatprep.subr.bf16.mxu0 0
        %1370 = vmatpush1.bf16.msra.mxu0 0
        %1371 = vmatprep.subr.bf16.mxu0 0
        %1372 = vmatpush1.bf16.msra.mxu0 0
        %1373 = vmatprep.mubr.bf16.mxu0 0
        %1374 = vmatmul.mubr.bf16.gmra.mrb[0].mxu0 %v1335
        %v1375 = vpop.f32.mrb[0].mxu0
        %v1376 = vadd.f32 0.0, %v1375
        %v1377 = vpop.f32.mrb[0].mxu0
        %v1378 = vpop.f32.mrb[0].mxu0
        %v1379 = vpop.f32.mrb[0].mxu0
        %1380 = vdwg.mxu0
        %v1382 = vsel %vm1093, %v1327, 0
        %v1385 = vsel %vm1337, %v1331, 0
        %1387 = vmatprep.subr.bf16.mxu0 0
        %1388 = vmatpush1.bf16.msra.mxu0 %v1385
        %1389 = vmatprep.subr.bf16.mxu0 0
        %1390 = vmatpush1.bf16.msra.mxu0 0
        %1391 = vmatprep.subr.bf16.mxu0 0
        %1392 = vmatpush1.bf16.msra.mxu0 0
        %1393 = vmatprep.subr.bf16.mxu0 0
        %1394 = vmatpush1.bf16.msra.mxu0 0
        %1395 = vmatprep.subr.bf16.mxu0 0
        %1396 = vmatpush1.bf16.msra.mxu0 0
        %1397 = vmatprep.subr.bf16.mxu0 0
        %1398 = vmatpush1.bf16.msra.mxu0 0
        %1399 = vmatprep.subr.bf16.mxu0 0
        %1400 = vmatpush1.bf16.msra.mxu0 0
        %1401 = vmatprep.subr.bf16.mxu0 0
        %1402 = vmatpush1.bf16.msra.mxu0 0
        %1403 = vmatprep.subr.bf16.mxu0 0
        %1404 = vmatpush1.bf16.msra.mxu0 0
        %1405 = vmatprep.subr.bf16.mxu0 0
        %1406 = vmatpush1.bf16.msra.mxu0 0
        %1407 = vmatprep.subr.bf16.mxu0 0
        %1408 = vmatpush1.bf16.msra.mxu0 0
        %1409 = vmatprep.subr.bf16.mxu0 0
        %1410 = vmatpush1.bf16.msra.mxu0 0
        %1411 = vmatprep.subr.bf16.mxu0 0
        %1412 = vmatpush1.bf16.msra.mxu0 0
        %1413 = vmatprep.subr.bf16.mxu0 0
        %1414 = vmatpush1.bf16.msra.mxu0 0
        %1415 = vmatprep.subr.bf16.mxu0 0
        %1416 = vmatpush1.bf16.msra.mxu0 0
        %1417 = vmatprep.subr.bf16.mxu0 0
        %1418 = vmatpush1.bf16.msra.mxu0 0
        %1419 = vmatprep.mubr.bf16.mxu0 0
        %1420 = vmatmul.mubr.bf16.gmra.mrb[0].mxu0 %v1382
        %v1421 = vpop.f32.mrb[0].mxu0
        %v1422 = vadd.f32 0.0, %v1421
        %v1423 = vpop.f32.mrb[0].mxu0
        %v1424 = vpop.f32.mrb[0].mxu0
        %v1425 = vpop.f32.mrb[0].mxu0
        %1426 = vdwg.mxu0
        %v1428 = vsel %vm1093, %v1328, 0
        %v1431 = vsel %vm1337, %v1332, 0
        %1433 = vmatprep.subr.bf16.mxu0 0
        %1434 = vmatpush1.bf16.msra.mxu0 %v1431
        %1435 = vmatprep.subr.bf16.mxu0 0
        %1436 = vmatpush1.bf16.msra.mxu0 0
        %1437 = vmatprep.subr.bf16.mxu0 0
        %1438 = vmatpush1.bf16.msra.mxu0 0
        %1439 = vmatprep.subr.bf16.mxu0 0
        %1440 = vmatpush1.bf16.msra.mxu0 0
        %1441 = vmatprep.subr.bf16.mxu0 0
        %1442 = vmatpush1.bf16.msra.mxu0 0
        %1443 = vmatprep.subr.bf16.mxu0 0
        %1444 = vmatpush1.bf16.msra.mxu0 0
        %1445 = vmatprep.subr.bf16.mxu0 0
        %1446 = vmatpush1.bf16.msra.mxu0 0
        %1447 = vmatprep.subr.bf16.mxu0 0
        %1448 = vmatpush1.bf16.msra.mxu0 0
        %1449 = vmatprep.subr.bf16.mxu0 0
        %1450 = vmatpush1.bf16.msra.mxu0 0
        %1451 = vmatprep.subr.bf16.mxu0 0
        %1452 = vmatpush1.bf16.msra.mxu0 0
        %1453 = vmatprep.subr.bf16.mxu0 0
        %1454 = vmatpush1.bf16.msra.mxu0 0
        %1455 = vmatprep.subr.bf16.mxu0 0
        %1456 = vmatpush1.bf16.msra.mxu0 0
        %1457 = vmatprep.subr.bf16.mxu0 0
        %1458 = vmatpush1.bf16.msra.mxu0 0
        %1459 = vmatprep.subr.bf16.mxu0 0
        %1460 = vmatpush1.bf16.msra.mxu0 0
        %1461 = vmatprep.subr.bf16.mxu0 0
        %1462 = vmatpush1.bf16.msra.mxu0 0
        %1463 = vmatprep.subr.bf16.mxu0 0
        %1464 = vmatpush1.bf16.msra.mxu0 0
        %1465 = vmatprep.mubr.bf16.mxu0 0
        %1466 = vmatmul.mubr.bf16.gmra.mrb[0].mxu0 %v1428
        %v1467 = vpop.f32.mrb[0].mxu0
        %v1468 = vadd.f32 0.0, %v1467
        %v1469 = vpop.f32.mrb[0].mxu0
        %v1470 = vpop.f32.mrb[0].mxu0
        %v1471 = vpop.f32.mrb[0].mxu0
        %1472 = vdwg.mxu0
        %v1474 = vsel %vm1093, %v1329, 0
        %v1477 = vsel %vm1337, %v1333, 0
        %1479 = vmatprep.subr.bf16.mxu0 0
        %1480 = vmatpush1.bf16.msra.mxu0 %v1477
        %1481 = vmatprep.subr.bf16.mxu0 0
        %1482 = vmatpush1.bf16.msra.mxu0 0
        %1483 = vmatprep.subr.bf16.mxu0 0
        %1484 = vmatpush1.bf16.msra.mxu0 0
        %1485 = vmatprep.subr.bf16.mxu0 0
        %1486 = vmatpush1.bf16.msra.mxu0 0
        %1487 = vmatprep.subr.bf16.mxu0 0
        %1488 = vmatpush1.bf16.msra.mxu0 0
        %1489 = vmatprep.subr.bf16.mxu0 0
        %1490 = vmatpush1.bf16.msra.mxu0 0
        %1491 = vmatprep.subr.bf16.mxu0 0
        %1492 = vmatpush1.bf16.msra.mxu0 0
        %1493 = vmatprep.subr.bf16.mxu0 0
        %1494 = vmatpush1.bf16.msra.mxu0 0
        %1495 = vmatprep.subr.bf16.mxu0 0
        %1496 = vmatpush1.bf16.msra.mxu0 0
        %1497 = vmatprep.subr.bf16.mxu0 0
        %1498 = vmatpush1.bf16.msra.mxu0 0
        %1499 = vmatprep.subr.bf16.mxu0 0
        %1500 = vmatpush1.bf16.msra.mxu0 0
        %1501 = vmatprep.subr.bf16.mxu0 0
        %1502 = vmatpush1.bf16.msra.mxu0 0
        %1503 = vmatprep.subr.bf16.mxu0 0
        %1504 = vmatpush1.bf16.msra.mxu0 0
        %1505 = vmatprep.subr.bf16.mxu0 0
        %1506 = vmatpush1.bf16.msra.mxu0 0
        %1507 = vmatprep.subr.bf16.mxu0 0
        %1508 = vmatpush1.bf16.msra.mxu0 0
        %1509 = vmatprep.subr.bf16.mxu0 0
        %1510 = vmatpush1.bf16.msra.mxu0 0
        %1511 = vmatprep.mubr.bf16.mxu0 0
        %1512 = vmatmul.mubr.bf16.gmra.mrb[0].mxu0 %v1474
        %v1513 = vpop.f32.mrb[0].mxu0
        %v1514 = vadd.f32 0.0, %v1513
        %v1515 = vpop.f32.mrb[0].mxu0
        %v1516 = vpop.f32.mrb[0].mxu0
        %v1517 = vpop.f32.mrb[0].mxu0
        %1518 = vdwg.mxu0
        %v1519 = vpack.c.bf16 %v1376, %v1376
        %v1520 = vpack.c.bf16 %v1422, %v1422
        %v1521 = vpack.c.bf16 %v1468, %v1468
        %v1522 = vpack.c.bf16 %v1514, %v1514
        %1523 = vst.msk [vmem:[#allocation5] sm:$0xf] %vm1065, %v1519
        %v1525 = vunpack.c.l.b16 %v1520
        %v1526 = vpack.c.b16 %v1525, %v1525
        %1527 = vrot.lane.b32.xlu0 %v1526, 8
        %v1528 = vpop.permute.xlu0 %1527
        %vm1530 = vcmask 126016
        %1531 = vst.msk [vmem:[#allocation5] sm:$0xf] %vm1530, %v1528
        %v1533 = vunpack.c.l.b16 %v1521
        %v1534 = vpack.c.b16 %v1533, %v1533
        %1535 = vrot.lane.b32.xlu0 %v1534, 16
        %v1536 = vpop.permute.xlu0 %1535
        %vm1538 = vcmask 191616
        %1539 = vst.msk [vmem:[#allocation5] sm:$0xf] %vm1538, %v1536
        %v1541 = vunpack.c.l.b16 %v1522
        %v1542 = vpack.c.b16 %v1541, %v1541
        %1543 = vrot.lane.b32.xlu0 %v1542, 24
        %v1544 = vpop.permute.xlu0 %1543
        %vm1546 = vcmask 257216
        %1547 = vst.msk [vmem:[#allocation5] sm:$0xf] %vm1546, %v1544
        %v1548 = vld [vmem:[#allocation5] sm:$0xf]
        %v1549 = vld [vmem:[#allocation18] sm:$0xf]
        %v1550 = vld [vmem:[#allocation18 + $0x4] sm:$0xf]
        %v1551 = vld [vmem:[#allocation18 + $0x8] sm:$0xf]
        %v1552 = vld [vmem:[#allocation18 + $0xc] sm:$0xf]
        %v1553 = vld [vmem:[#allocation20] sm:$0x1]
        %v1555 = vlaneseq
        %v1556 = vshrl.u32 %v1555, 7
        %v1557 = vsub.s32 0, %v1556
        %v1558 = vrot.slane %v1553, %v1557
        %v1564 = vunpack.c.l.b16 %v1549
        %v1565 = vunpack.c.l.b16 %v1550
        %v1566 = vunpack.c.l.b16 %v1551
        %v1567 = vunpack.c.l.b16 %v1552
        %v1568 = vpack.c.b16 %v1565, %v1564
        %v1569 = vpack.c.b16 %v1567, %v1566
        %v1573 = vsel %vm974, %v1548, 0
        %1575 = vmatprep.subr.bf16.mxu0 0
        %1576 = vmatpush1.bf16.msra.mxu0 %v1568
        %1577 = vmatprep.subr.bf16.mxu0 0
        %1578 = vmatpush1.bf16.msra.mxu0 %v1569
        %1579 = vmatprep.subr.bf16.mxu0 0
        %1580 = vmatpush1.bf16.msra.mxu0 0
        %1581 = vmatprep.subr.bf16.mxu0 0
        %1582 = vmatpush1.bf16.msra.mxu0 0
        %1583 = vmatprep.subr.bf16.mxu0 0
        %1584 = vmatpush1.bf16.msra.mxu0 0
        %1585 = vmatprep.subr.bf16.mxu0 0
        %1586 = vmatpush1.bf16.msra.mxu0 0
        %1587 = vmatprep.subr.bf16.mxu0 0
        %1588 = vmatpush1.bf16.msra.mxu0 0
        %1589 = vmatprep.subr.bf16.mxu0 0
        %1590 = vmatpush1.bf16.msra.mxu0 0
        %1591 = vmatprep.subr.bf16.mxu0 0
        %1592 = vmatpush1.bf16.msra.mxu0 0
        %1593 = vmatprep.subr.bf16.mxu0 0
        %1594 = vmatpush1.bf16.msra.mxu0 0
        %1595 = vmatprep.subr.bf16.mxu0 0
        %1596 = vmatpush1.bf16.msra.mxu0 0
        %1597 = vmatprep.subr.bf16.mxu0 0
        %1598 = vmatpush1.bf16.msra.mxu0 0
        %1599 = vmatprep.subr.bf16.mxu0 0
        %1600 = vmatpush1.bf16.msra.mxu0 0
        %1601 = vmatprep.subr.bf16.mxu0 0
        %1602 = vmatpush1.bf16.msra.mxu0 0
        %1603 = vmatprep.subr.bf16.mxu0 0
        %1604 = vmatpush1.bf16.msra.mxu0 0
        %1605 = vmatprep.subr.bf16.mxu0 0
        %1606 = vmatpush1.bf16.msra.mxu0 0
        %1607 = vmatprep.mubr.bf16.mxu0 0
        %1608 = vmatmul.mubr.bf16.gmra.mrb[0].mxu0 %v1573
        %v1609 = vpop.f32.mrb[0].mxu0
        %v1610 = vadd.f32 %v1558, %v1609
        %v1611 = vpop.f32.mrb[0].mxu0
        %v1612 = vpop.f32.mrb[0].mxu0
        %v1613 = vpop.f32.mrb[0].mxu0
        %1614 = vdwg.mxu0
        %v1615 = vadd.f32 %v779, %v1610
        %v1616 = vld [vmem:[#allocation21] sm:$0x1]
        %v1617 = vld [vmem:[#allocation23] sm:$0x1]
        %v1618 = vsel %vm974, %v1615, 0.0
        %1619 = vadd.xlane.f32.xlu0 %v1618
        %v1620 = vpop.xlane.xlu0 %1619
        %v1621 = vmul.f32 %v1615, %v1615
        %v1622 = vsel %vm974, %v1621, 0.0
        %1623 = vadd.xlane.f32.xlu0 %v1622
        %v1624 = vpop.xlane.xlu0 %1623
        %v1625 = vmul.f32 %v1620, 0.03125
        %v1626 = vmul.f32 %v1624, 0.03125
        %v1627 = vmul.f32 %v1625, %v1625
        %v1628 = vsub.f32 %v1626, %v1627
        %v1629 = vsub.f32 %v1615, %v1625
        %v1630 = vadd.f32 %v1628, 1e-05
        %v1631 = vrsqrt.pop %v1630
        %v1632 = vmul.f32 %v1629, %v1631
        %v1634 = vlaneseq
        %v1635 = vshrl.u32 %v1634, 7
        %v1636 = vsub.s32 0, %v1635
        %v1637 = vrot.slane %v1616, %v1636
        %v1639 = vmul.f32 %v1632, %v1637
        %v1641 = vlaneseq
        %v1642 = vshrl.u32 %v1641, 7
        %v1643 = vsub.s32 0, %v1642
        %v1644 = vrot.slane %v1617, %v1643
        %v1646 = vadd.f32 %v1639, %v1644
        %v1647 = vpack.c.bf16 %v1646, %v1646
        %v1648 = vld [vmem:[#allocation24] sm:$0xf]
        %v1649 = vld [vmem:[#allocation24 + $0x4] sm:$0xf]
        %v1650 = vld [vmem:[#allocation24 + $0x8] sm:$0xf]
        %v1651 = vld [vmem:[#allocation24 + $0xc] sm:$0xf]
        %v1652 = vld [vmem:[#allocation26] sm:$0x1]
        %v1654 = vlaneseq
        %v1655 = vshrl.u32 %v1654, 7
        %v1656 = vsub.s32 0, %v1655
        %v1657 = vrot.slane %v1652, %v1656
        %v1663 = vunpack.c.l.b16 %v1648
        %v1664 = vunpack.c.l.b16 %v1649
        %v1665 = vunpack.c.l.b16 %v1650
        %v1666 = vunpack.c.l.b16 %v1651
        %v1667 = vpack.c.b16 %v1664, %v1663
        %v1668 = vpack.c.b16 %v1666, %v1665
        %v1672 = vsel %vm974, %v1647, 0
        %1674 = vmatprep.subr.bf16.mxu0 0
        %1675 = vmatpush1.bf16.msra.mxu0 %v1667
        %1676 = vmatprep.subr.bf16.mxu0 0
        %1677 = vmatpush1.bf16.msra.mxu0 %v1668
        %1678 = vmatprep.subr.bf16.mxu0 0
        %1679 = vmatpush1.bf16.msra.mxu0 0
        %1680 = vmatprep.subr.bf16.mxu0 0
        %1681 = vmatpush1.bf16.msra.mxu0 0
        %1682 = vmatprep.subr.bf16.mxu0 0
        %1683 = vmatpush1.bf16.msra.mxu0 0
        %1684 = vmatprep.subr.bf16.mxu0 0
        %1685 = vmatpush1.bf16.msra.mxu0 0
        %1686 = vmatprep.subr.bf16.mxu0 0
        %1687 = vmatpush1.bf16.msra.mxu0 0
        %1688 = vmatprep.subr.bf16.mxu0 0
        %1689 = vmatpush1.bf16.msra.mxu0 0
        %1690 = vmatprep.subr.bf16.mxu0 0
        %1691 = vmatpush1.bf16.msra.mxu0 0
        %1692 = vmatprep.subr.bf16.mxu0 0
        %1693 = vmatpush1.bf16.msra.mxu0 0
        %1694 = vmatprep.subr.bf16.mxu0 0
        %1695 = vmatpush1.bf16.msra.mxu0 0
        %1696 = vmatprep.subr.bf16.mxu0 0
        %1697 = vmatpush1.bf16.msra.mxu0 0
        %1698 = vmatprep.subr.bf16.mxu0 0
        %1699 = vmatpush1.bf16.msra.mxu0 0
        %1700 = vmatprep.subr.bf16.mxu0 0
        %1701 = vmatpush1.bf16.msra.mxu0 0
        %1702 = vmatprep.subr.bf16.mxu0 0
        %1703 = vmatpush1.bf16.msra.mxu0 0
        %1704 = vmatprep.subr.bf16.mxu0 0
        %1705 = vmatpush1.bf16.msra.mxu0 0
        %1706 = vmatprep.mubr.bf16.mxu0 0
        %1707 = vmatmul.mubr.bf16.gmra.mrb[0].mxu0 %v1672
        %v1708 = vpop.f32.mrb[0].mxu0
        %v1709 = vadd.f32 %v1657, %v1708
        %v1710 = vpop.f32.mrb[0].mxu0
        %v1711 = vpop.f32.mrb[0].mxu0
        %v1712 = vpop.f32.mrb[0].mxu0
        %1713 = vdwg.mxu0
        %v1714 = vmul.f32 %v1709, 0.5
        %v1715 = vmul.f32 %v1709, 0.70710677
        %v1716 = verf.f32.pop %v1715
        %v1717 = vadd.f32 %v1716, 1.0
        %v1718 = vmul.f32 %v1714, %v1717
        %v1719 = vpack.c.bf16 %v1718, %v1718
        %v1720 = vld [vmem:[#allocation27] sm:$0xf]
        %v1721 = vld [vmem:[#allocation27 + $0x4] sm:$0xf]
        %v1722 = vld [vmem:[#allocation27 + $0x8] sm:$0xf]
        %v1723 = vld [vmem:[#allocation27 + $0xc] sm:$0xf]
        %v1724 = vld [vmem:[#allocation27 + $0x10] sm:$0xf]
        %v1725 = vld [vmem:[#allocation27 + $0x14] sm:$0xf]
        %v1726 = vld [vmem:[#allocation27 + $0x18] sm:$0xf]
        %v1727 = vld [vmem:[#allocation27 + $0x1c] sm:$0xf]
        %v1728 = vld [vmem:[#allocation27 + $0x20] sm:$0xf]
        %v1729 = vld [vmem:[#allocation27 + $0x24] sm:$0xf]
        %v1730 = vld [vmem:[#allocation27 + $0x28] sm:$0xf]
        %v1731 = vld [vmem:[#allocation27 + $0x2c] sm:$0xf]
        %v1732 = vld [vmem:[#allocation27 + $0x30] sm:$0xf]
        %v1733 = vld [vmem:[#allocation27 + $0x34] sm:$0xf]
        %v1734 = vld [vmem:[#allocation27 + $0x38] sm:$0xf]
        %v1735 = vld [vmem:[#allocation27 + $0x3c] sm:$0xf]
        %v1736 = vld [vmem:[#allocation29] sm:$0x1]
        %v1738 = vlaneseq
        %v1739 = vshrl.u32 %v1738, 7
        %v1740 = vsub.s32 0, %v1739
        %v1741 = vrot.slane %v1736, %v1740
        %v1759 = vunpack.c.l.b16 %v1720
        %v1760 = vunpack.c.l.b16 %v1721
        %v1761 = vunpack.c.l.b16 %v1722
        %v1762 = vunpack.c.l.b16 %v1723
        %v1763 = vunpack.c.l.b16 %v1724
        %v1764 = vunpack.c.l.b16 %v1725
        %v1765 = vunpack.c.l.b16 %v1726
        %v1766 = vunpack.c.l.b16 %v1727
        %v1767 = vunpack.c.l.b16 %v1728
        %v1768 = vunpack.c.l.b16 %v1729
        %v1769 = vunpack.c.l.b16 %v1730
        %v1770 = vunpack.c.l.b16 %v1731
        %v1771 = vunpack.c.l.b16 %v1732
        %v1772 = vunpack.c.l.b16 %v1733
        %v1773 = vunpack.c.l.b16 %v1734
        %v1774 = vunpack.c.l.b16 %v1735
        %v1775 = vpack.c.b16 %v1760, %v1759
        %v1776 = vpack.c.b16 %v1762, %v1761
        %v1777 = vpack.c.b16 %v1764, %v1763
        %v1778 = vpack.c.b16 %v1766, %v1765
        %v1779 = vpack.c.b16 %v1768, %v1767
        %v1780 = vpack.c.b16 %v1770, %v1769
        %v1781 = vpack.c.b16 %v1772, %v1771
        %v1782 = vpack.c.b16 %v1774, %v1773
        %1791 = vmatprep.subr.bf16.mxu0 0
        %1792 = vmatpush1.bf16.msra.mxu0 %v1775
        %1793 = vmatprep.subr.bf16.mxu0 0
        %1794 = vmatpush1.bf16.msra.mxu0 %v1776
        %1795 = vmatprep.subr.bf16.mxu0 0
        %1796 = vmatpush1.bf16.msra.mxu0 %v1777
        %1797 = vmatprep.subr.bf16.mxu0 0
        %1798 = vmatpush1.bf16.msra.mxu0 %v1778
        %1799 = vmatprep.subr.bf16.mxu0 0
        %1800 = vmatpush1.bf16.msra.mxu0 %v1779
        %1801 = vmatprep.subr.bf16.mxu0 0
        %1802 = vmatpush1.bf16.msra.mxu0 %v1780
        %1803 = vmatprep.subr.bf16.mxu0 0
        %1804 = vmatpush1.bf16.msra.mxu0 %v1781
        %1805 = vmatprep.subr.bf16.mxu0 0
        %1806 = vmatpush1.bf16.msra.mxu0 %v1782
        %1807 = vmatprep.subr.bf16.mxu0 0
        %1808 = vmatpush1.bf16.msra.mxu0 0
        %1809 = vmatprep.subr.bf16.mxu0 0
        %1810 = vmatpush1.bf16.msra.mxu0 0
        %1811 = vmatprep.subr.bf16.mxu0 0
        %1812 = vmatpush1.bf16.msra.mxu0 0
        %1813 = vmatprep.subr.bf16.mxu0 0
        %1814 = vmatpush1.bf16.msra.mxu0 0
        %1815 = vmatprep.subr.bf16.mxu0 0
        %1816 = vmatpush1.bf16.msra.mxu0 0
        %1817 = vmatprep.subr.bf16.mxu0 0
        %1818 = vmatpush1.bf16.msra.mxu0 0
        %1819 = vmatprep.subr.bf16.mxu0 0
        %1820 = vmatpush1.bf16.msra.mxu0 0
        %1821 = vmatprep.subr.bf16.mxu0 0
        %1822 = vmatpush1.bf16.msra.mxu0 0
        %1823 = vmatprep.mubr.bf16.mxu0 0
        %1824 = vmatmul.mubr.bf16.gmra.mrb[0].mxu0 %v1719
        %v1825 = vpop.f32.mrb[0].mxu0
        %v1826 = vadd.f32 %v1741, %v1825
        %v1827 = vpop.f32.mrb[0].mxu0
        %v1828 = vpop.f32.mrb[0].mxu0
        %v1829 = vpop.f32.mrb[0].mxu0
        %1830 = vdwg.mxu0
        %v1831 = vadd.f32 %v1615, %v1826
        %1832 = vst.msk [vmem:[%s770] sm:$0xff] %vm974, %v1831
        %s1833 = sand.u32 %s395, 1
        %s1834 = scalar_lea.sflag [#allocation8], %s1833
        %s1835 = sand.u32 %s395, 1
        %s1836 = smul.addr %s1835, 8
        %s1837 = scalar_lea.vmem [#allocation30], %s1836
        %s1838 = sand.u32 %s423, 1
        %s1839 = scalar_lea.sflag [#allocation32], %s1838
        %s1840 = sand.u32 %s423, 1
        %s1841 = smul.addr %s1840, 32
        %s1842 = scalar_lea.vmem [#allocation31], %s1841
        // Predicated region
        $region145: #{tpu_custom_call.1} parent=79 // pred_check
          %p1843 = pneg %p405
        $region146: #{tpu_custom_call.1} parent=79 // pred_check_branch
          %1845 = sbr.rel (%p1843) target = $region148
        $region147: #{tpu_custom_call.1} parent=79 // pred_region
          %s1847 = ssub.s32 128, 128
          %1848 = vsyncadd %s1834, %s1847
          %s1849 = sadd.s32 %s51, %s50
          %s1850 = smul.addr %s1849, 128
          %s1851 = scalar_lea.hbm %s15, %s1850
          %s1853 = sshll.u32 %s1837, 4
          %s1854 = int_to_ptr.vmem [resolvable:$true] %s1853
          %1856 = dma.vmem_to_hbm [thread:$0]  %s1854, 128, %s1851, %s1834
        $region148: #{tpu_custom_call.1} parent=79 // pred_fallthru
          _
        // Predicated region
        $region149: #{tpu_custom_call.1} parent=79 // pred_check
          %p1857 = pneg %p433
        $region150: #{tpu_custom_call.1} parent=79 // pred_check_branch
          %1859 = sbr.rel (%p1857) target = $region152
        $region151: #{tpu_custom_call.1} parent=79 // pred_region
          %s1861 = ssub.s32 512, 512
          %1862 = vsyncadd %s1839, %s1861
          %s1863 = smul.addr %s50, 4
          %s1864 = sadd.s32 %s51, %s1863
          %s1865 = smul.addr %s1864, 128
          %s1866 = scalar_lea.hbm %s16, %s1865
          %s1867 = sshll.u32 %s1842, 4
          %s1868 = int_to_ptr.vmem [resolvable:$true] %s1867
          %1873 = dma.vmem_to_hbm [thread:$0]  %s1868, 512, %s1866, %s1839, 128, 128, 8
        $region152: #{tpu_custom_call.1} parent=79 // pred_fallthru
          _
      $region80: #{tpu_custom_call.1} parent=5 // pred_fallthru
        _
      %p1874 = scmp.le.s32.totalorder 2, %s41
      // Predicated region
      $region153: #{tpu_custom_call.1} parent=5 // pred_check
        %p1875 = pneg %p1874
      $region154: #{tpu_custom_call.1} parent=5 // pred_check_branch
        %1877 = sbr.rel (%p1875) target = $region156
      $region155: #{tpu_custom_call.1} parent=5 // pred_region
        %s1878 = ssub.s32 %s41, 2
        // Predicated region
        $region157: #{tpu_custom_call.1} parent=155 // pred_check
          %p1879 = pneg %p411
        $region158: #{tpu_custom_call.1} parent=155 // pred_check_branch
          %1881 = sbr.rel (%p1879) target = $region160
        $region159: #{tpu_custom_call.1} parent=155 // pred_region
          %s1882 = sand.u32 %s396, 1
          %s1883 = scalar_lea.sflag [#allocation8], %s1882
          %s1884 = sand.u32 %s396, 1
          %s1885 = smul.addr %s1884, 8
          %s1886 = scalar_lea.vmem [#allocation30], %s1885
          %1887 = dma.done %s1883, 128
        $region160: #{tpu_custom_call.1} parent=155 // pred_fallthru
          _
        // Predicated region
        $region161: #{tpu_custom_call.1} parent=155 // pred_check
          %p1888 = pneg %p439
        $region162: #{tpu_custom_call.1} parent=155 // pred_check_branch
          %1890 = sbr.rel (%p1888) target = $region164
        $region163: #{tpu_custom_call.1} parent=155 // pred_region
          %s1891 = sand.u32 %s424, 1
          %s1892 = scalar_lea.sflag [#allocation32], %s1891
          %s1893 = sand.u32 %s424, 1
          %s1894 = smul.addr %s1893, 32
          %s1895 = scalar_lea.vmem [#allocation31], %s1894
          %1896 = dma.done %s1892, 512
        $region164: #{tpu_custom_call.1} parent=155 // pred_fallthru
          _
      $region156: #{tpu_custom_call.1} parent=5 // pred_fallthru
        _
    $region6: #{tpu_custom_call.1} parent=1 // loop_footer
      %s45 = sadd.s32 1, %s41
    $region7: #{tpu_custom_call.1} parent=1 // loop_footer_branch
      %40 = sbr.rel target = $region3
    $region8: #{tpu_custom_call.1} parent=1 // loop_exit
      _
    %1897 = vsyncpa [#allocation7], 1
    %s1898 = scalar_lea.sflag [#allocation7], 1
    %1899 = vsyncpa %s1898, 1
    %1900 = vsyncpa [#allocation10], 1
    %s1901 = scalar_lea.sflag [#allocation10], 1
    %1902 = vsyncpa %s1901, 1
    %1903 = vsyncpa [#allocation13], 1
    %1904 = vsyncpa [#allocation16], 1
    %1905 = vsyncpa [#allocation19], 1
    %1906 = vsyncpa [#allocation22], 1
    %1907 = vsyncpa [#allocation25], 1
    %1908 = vsyncpa [#allocation28], 1
    %1909 = vsyncpa [#allocation8], 1
    %s1910 = scalar_lea.sflag [#allocation8], 1
    %1911 = vsyncpa %s1910, 1
    %1912 = vsyncpa [#allocation32], 1
    %s1913 = scalar_lea.sflag [#allocation32], 1
    %1914 = vsyncpa %s1913, 1

</llo_original>
